<compile_context>
chip_gen: v6e
topology: v6e:2x2x1
jax: 0.10.0
libtpu: 0.0.40
codegen_flags: <defaults>
</compile_context>

<pallas_src>
import functools
import math

import jax
import jax.numpy as jnp
from jax.experimental import pallas as pl
from jax.experimental.pallas import tpu as pltpu

MID = 400        # original hidden width
MID_PAD = 512    # padded hidden width (4x128)
OUT = 128        # embedding width


def _round_up(x, m):
    return (x + m - 1) // m * m


def _choose_tile(batch):
    """Batch rows per grid step: single full tile for tiny batches, >=2 lane-aligned steps
    for batch > 128, 256-row tiles (full MXU M on v6e/v7x) once the batch is large."""
    if batch <= 128:
        return _round_up(max(batch, 1), 8)
    if batch < 512:
        return 128
    return 256


def _embed_kernel(x_ref,
                  w1_ref, b1_ref, w2o_ref, b2o_ref, w2g_ref, b2g_ref, w3d_ref, b3d_ref,
                  out_ref, *, alpha, neg_inv_one_minus_gamma):
    f32 = jnp.float32
    bf16 = jnp.bfloat16

    x = x_ref[...].astype(bf16)                                   # (tb, K) — concat done in wrapper,
                                                                  # 1/max_action folded into weights
    # ---- layer 1: fused obs|goal encoders via block-diagonal weight ----
    h = jnp.dot(x, w1_ref[...], preferred_element_type=f32) + b1_ref[...]     # (tb, 1024)
    h = jnp.maximum(h, 0.0).astype(bf16)

    # ---- layer 2: separate encoders (block-diag here would double the MACs) ----
    h_o = jnp.dot(h[:, :MID_PAD], w2o_ref[...], preferred_element_type=f32) + b2o_ref[...]
    h_o = jnp.maximum(h_o, 0.0).astype(bf16)                                   # (tb, 512)
    h_g = jnp.dot(h[:, MID_PAD:], w2g_ref[...], preferred_element_type=f32) + b2g_ref[...]
    h_g = jnp.maximum(h_g, 0.0).astype(bf16)                                   # (tb, 512)

    # ---- layer 3 fused into the embedding difference: d = s - g directly ----
    hc = jnp.concatenate([h_o, h_g], axis=-1)                                  # (tb, 1024) bf16
    d = jnp.dot(hc, w3d_ref[...], preferred_element_type=f32) + b3d_ref[...]   # (tb, 128) f32

    # ---- L2 metric + gamma-horizon transform, stored lane-dense as a (1, tb) row ----
    dist = jnp.sqrt(jnp.sum(d * d, axis=-1))                                   # (tb,)
    res = (1.0 - jnp.exp(dist * alpha)) * neg_inv_one_minus_gamma              # (tb,)
    out_ref[...] = res[None, :]


def init_params(key, obs_act_dim, goal_dim):
    """Unpadded f32 params (torch.nn.Linear default init); weights stored transposed (in, out)."""
    ks = jax.random.split(key, 12)

    def linear(kw, kb, fan_in, fan_out):
        bound = 1.0 / math.sqrt(fan_in)
        w = jax.random.uniform(kw, (fan_in, fan_out), jnp.float32, -bound, bound)
        b = jax.random.uniform(kb, (1, fan_out), jnp.float32, -bound, bound)
        return w, b

    w1o, b1o = linear(ks[0], ks[1], obs_act_dim, MID)
    w2o, b2o = linear(ks[2], ks[3], MID, MID)
    w3o, b3o = linear(ks[4], ks[5], MID, OUT)
    w1g, b1g = linear(ks[6], ks[7], goal_dim, MID)
    w2g, b2g = linear(ks[8], ks[9], MID, MID)
    w3g, b3g = linear(ks[10], ks[11], MID, OUT)
    return (w1o, b1o, w2o, b2o, w3o, b3o, w1g, b1g, w2g, b2g, w3g, b3g)


def prepare_params(params, obs_dim, act_dim, goal_dim, max_action):
    """Build kernel params:
       * hidden padded 400->512 with zeros (semantics preserved: padded biases are 0, ReLU(0)=0),
       * layer 1 as a block-diagonal (K, 1024) weight over [obs | act | goal] with 1/max_action
         folded into the action rows,
       * layer 3 fused into the difference: W3d = [W3o; -W3g], b3d = b3o - b3g,
       * weights in bf16, biases in f32."""
    (w1o, b1o, w2o, b2o, w3o, b3o, w1g, b1g, w2g, b2g, w3g, b3g) = params
    p = MID_PAD - MID
    pad_cols = lambda w: jnp.pad(w, ((0, 0), (0, p)))
    pad_rows = lambda w: jnp.pad(w, ((0, p), (0, 0)))
    pad_bias = lambda b: jnp.pad(b, ((0, 0), (0, p)))
    bf = lambda a: a.astype(jnp.bfloat16)

    # layer 1 (block-diagonal, action scaling folded in)
    scale = jnp.concatenate([jnp.ones((obs_dim, 1), jnp.float32),
                             jnp.full((act_dim, 1), 1.0 / max_action, jnp.float32)], axis=0)
    w1o_p = pad_cols(w1o) * scale                          # (obs_dim+act_dim, 512)
    w1g_p = pad_cols(w1g)                                  # (goal_dim, 512)
    K = obs_dim + act_dim + goal_dim
    w1 = jnp.zeros((K, 2 * MID_PAD), jnp.float32)
    w1 = w1.at[:obs_dim + act_dim, :MID_PAD].set(w1o_p)
    w1 = w1.at[obs_dim + act_dim:, MID_PAD:].set(w1g_p)
    b1 = jnp.concatenate([pad_bias(b1o), pad_bias(b1g)], axis=1)   # (1, 1024)

    # layer 2
    w2o_p, b2o_p = pad_cols(pad_rows(w2o)), pad_bias(b2o)
    w2g_p, b2g_p = pad_cols(pad_rows(w2g)), pad_bias(b2g)

    # layer 3 fused into the difference
    w3d = jnp.concatenate([pad_rows(w3o), -pad_rows(w3g)], axis=0)  # (1024, 128)
    b3d = b3o - b3g                                                 # (1, 128)

    return (bf(w1), b1, bf(w2o_p), b2o_p, bf(w2g_p), b2g_p, bf(w3d), b3d)


def embed_net_wrapper_forward(obs, goal, actions, kparams, *, gamma):
    B = obs.shape[0]
    # trace-time concat of tiny per-row features (17 floats/row); scaling already in the weights
    x = jnp.concatenate([obs, actions, goal], axis=1)
    K = x.shape[1]

    tb = _choose_tile(B)
    b_pad = _round_up(B, tb)
    if b_pad != B:
        x = jnp.pad(x, ((0, b_pad - B), (0, 0)))

    alpha = math.log(gamma)                    # pure Python constants, no device round trip
    neg_inv_1mg = -1.0 / (1.0 - gamma)

    kernel = functools.partial(
        _embed_kernel, alpha=alpha, neg_inv_one_minus_gamma=neg_inv_1mg)

    data_spec = pl.BlockSpec((tb, K), lambda i: (i, 0))              # batch-tiled input
    weight_spec = lambda a: pl.BlockSpec(a.shape, lambda i: (0, 0))  # resident in VMEM

    out_row = pl.pallas_call(
        kernel,
        out_shape=jax.ShapeDtypeStruct((1, b_pad), jnp.float32),     # lane-dense output row
        grid=(b_pad // tb,),
        in_specs=[data_spec] + [weight_spec(a) for a in kparams],
        out_specs=pl.BlockSpec((1, tb), lambda i: (0, i)),
        compiler_params=pltpu.CompilerParams(
            dimension_semantics=("parallel",),
            vmem_limit_bytes=32 * 1024 * 1024),
    )(x, *kparams)
    return out_row[0, :B].reshape(B, 1)


def reference_forward_fused(obs, goal, actions, kparams, *, gamma):
    """Pure-JAX reference using the same fused/padded bf16 params as the kernel."""
    (w1, b1, w2o, b2o, w2g, b2g, w3d, b3d) = kparams
    f32, bf16 = jnp.float32, jnp.bfloat16
    x = jnp.concatenate([obs, actions, goal], axis=1).astype(bf16)
    h = jnp.dot(x, w1, preferred_element_type=f32) + b1
    h = jnp.maximum(h, 0.0).astype(bf16)
    h_o = jnp.maximum(jnp.dot(h[:, :MID_PAD], w2o, preferred_element_type=f32) + b2o, 0.0).astype(bf16)
    h_g = jnp.maximum(jnp.dot(h[:, MID_PAD:], w2g, preferred_element_type=f32) + b2g, 0.0).astype(bf16)
    d = jnp.dot(jnp.concatenate([h_o, h_g], axis=-1), w3d, preferred_element_type=f32) + b3d
    dist = jnp.sqrt(jnp.sum(d * d, axis=-1, keepdims=True))
    return -(1.0 - jnp.exp(dist * math.log(gamma))) / (1.0 - gamma)


def reference_forward_f32(obs, goal, actions, raw_params, *, max_action, gamma):
    """Original (unfused, f32) PyTorch semantics."""
    (w1o, b1o, w2o, b2o, w3o, b3o, w1g, b1g, w2g, b2g, w3g, b3g) = raw_params
    s = jnp.concatenate([obs, actions / max_action], axis=1)
    s = jnp.maximum(s @ w1o + b1o, 0.0)
    s = jnp.maximum(s @ w2o + b2o, 0.0)
    s = s @ w3o + b3o
    g = jnp.maximum(goal @ w1g + b1g, 0.0)
    g = jnp.maximum(g @ w2g + b2g, 0.0)
    g = g @ w3g + b3g
    dist = jnp.sqrt(jnp.sum((s - g) ** 2, axis=-1, keepdims=True))
    return -(1.0 - jnp.exp(dist * math.log(gamma))) / (1.0 - gamma)


if __name__ == "__main__":
    # env_params / args consistent with the module: args.layer = 3, mid=400, out=128.
    obs_only_dim, act_dim, goal_dim = 10, 4, 3
    obs_act_dim = obs_only_dim + act_dim          # EmbedNet.obs_dim = obs + action = 14
    max_action = 2.0
    gamma = 0.98

    key = jax.random.PRNGKey(0)
    k_par = jax.random.fold_in(key, 12345)
    raw_params = init_params(k_par, obs_act_dim, goal_dim)
    kparams = prepare_params(raw_params, obs_only_dim, act_dim, goal_dim, max_action)

    # B=8 exercises the single-step (full-extent output block) path,
    # B=200 exercises batch padding + multi-step lane-dense (1, 128) output blocks.
    for B in (8, 200):
        ko, kg, ka = jax.random.split(jax.random.fold_in(key, B), 3)
        obs = jax.random.normal(ko, (B, obs_only_dim), jnp.float32)
        goal = jax.random.normal(kg, (B, goal_dim), jnp.float32)
        actions = jax.random.uniform(ka, (B, act_dim), jnp.float32, -max_action, max_action)

        out = embed_net_wrapper_forward(obs, goal, actions, kparams, gamma=gamma)
        out = jax.block_until_ready(out)
        assert out.shape == (B, 1), out.shape

        ref = reference_forward_fused(obs, goal, actions, kparams, gamma=gamma)
        assert jnp.allclose(out, ref, atol=2e-4, rtol=2e-4), (B, out, ref)

        ref32 = reference_forward_f32(obs, goal, actions, raw_params,
                                      max_action=max_action, gamma=gamma)
        assert jnp.allclose(out, ref32, atol=5e-2, rtol=5e-2), (B, out, ref32)

    print("KERNEL_OK")
</pallas_src>

<mosaic_0001>
module attributes {stable_mosaic.version = 11 : i64} {
  func.func @_embed_kernel(%arg0: i32, %arg1: memref<8x17xf32, #tpu.memory_space<vmem>>, %arg2: memref<17x1024xbf16, #tpu.memory_space<vmem>>, %arg3: memref<1x1024xf32, #tpu.memory_space<vmem>>, %arg4: memref<512x512xbf16, #tpu.memory_space<vmem>>, %arg5: memref<1x512xf32, #tpu.memory_space<vmem>>, %arg6: memref<512x512xbf16, #tpu.memory_space<vmem>>, %arg7: memref<1x512xf32, #tpu.memory_space<vmem>>, %arg8: memref<1024x128xbf16, #tpu.memory_space<vmem>>, %arg9: memref<1x128xf32, #tpu.memory_space<vmem>>, %arg10: memref<1x8xf32, #tpu.memory_space<vmem>>) attributes {dimension_semantics = [#tpu.dimension_semantics<parallel>], iteration_bounds = array<i64: 1>, scalar_prefetch = 0 : i64, scratch_operands = 0 : i64, tpu.core_type = #tpu.core_type<tc>, window_params = [{transform_indices = @transform_0, window_bounds = array<i64: 8, 17>}, {pipeline_mode = #tpu.pipeline_mode<synchronous>, transform_indices = @transform_1, window_bounds = array<i64: 17, 1024>}, {pipeline_mode = #tpu.pipeline_mode<synchronous>, transform_indices = @transform_2, window_bounds = array<i64: 1, 1024>}, {pipeline_mode = #tpu.pipeline_mode<synchronous>, transform_indices = @transform_3, window_bounds = array<i64: 512, 512>}, {pipeline_mode = #tpu.pipeline_mode<synchronous>, transform_indices = @transform_4, window_bounds = array<i64: 1, 512>}, {pipeline_mode = #tpu.pipeline_mode<synchronous>, transform_indices = @transform_5, window_bounds = array<i64: 512, 512>}, {pipeline_mode = #tpu.pipeline_mode<synchronous>, transform_indices = @transform_6, window_bounds = array<i64: 1, 512>}, {pipeline_mode = #tpu.pipeline_mode<synchronous>, transform_indices = @transform_7, window_bounds = array<i64: 1024, 128>}, {pipeline_mode = #tpu.pipeline_mode<synchronous>, transform_indices = @transform_8, window_bounds = array<i64: 1, 128>}, {transform_indices = @transform_9, window_bounds = array<i64: 1, 8>}]} {
    %c0 = arith.constant 0 : index
    %c0_0 = arith.constant 0 : index
    %0 = vector.load %arg1[%c0, %c0_0] : memref<8x17xf32, #tpu.memory_space<vmem>>, vector<8x17xf32>
    %1 = arith.truncf %0 : vector<8x17xf32> to vector<8x17xbf16>
    %c0_1 = arith.constant 0 : index
    %c0_2 = arith.constant 0 : index
    %2 = vector.load %arg2[%c0_1, %c0_2] : memref<17x1024xbf16, #tpu.memory_space<vmem>>, vector<17x1024xbf16>
    %cst = arith.constant dense<0.000000e+00> : vector<8x1024xf32>
    %3 = tpu.matmul %1, %2, %cst {dimension_numbers = #tpu.dot_dimension_numbers<[1], [0], [0], [1], [0, 0, 1, 1], [], []>} : vector<8x17xbf16>, vector<17x1024xbf16>, vector<8x1024xf32> -> vector<8x1024xf32>
    %c0_3 = arith.constant 0 : index
    %c0_4 = arith.constant 0 : index
    %4 = vector.load %arg3[%c0_3, %c0_4] : memref<1x1024xf32, #tpu.memory_space<vmem>>, vector<1x1024xf32>
    %5 = vector.broadcast %4 : vector<1x1024xf32> to vector<8x1024xf32>
    %6 = arith.addf %3, %5 : vector<8x1024xf32>
    %cst_5 = arith.constant 0.000000e+00 : f32
    %7 = vector.broadcast %cst_5 : f32 to vector<8x1024xf32>
    %8 = arith.maximumf %6, %7 : vector<8x1024xf32>
    %9 = arith.truncf %8 : vector<8x1024xf32> to vector<8x1024xbf16>
    %10 = vector.extract_strided_slice %9 {offsets = [0, 0], sizes = [8, 512], strides = [1, 1]} : vector<8x1024xbf16> to vector<8x512xbf16>
    %c0_6 = arith.constant 0 : index
    %c0_7 = arith.constant 0 : index
    %11 = vector.load %arg4[%c0_6, %c0_7] : memref<512x512xbf16, #tpu.memory_space<vmem>>, vector<512x512xbf16>
    %cst_8 = arith.constant dense<0.000000e+00> : vector<8x512xf32>
    %12 = tpu.matmul %10, %11, %cst_8 {dimension_numbers = #tpu.dot_dimension_numbers<[1], [0], [0], [1], [0, 0, 1, 1], [], []>} : vector<8x512xbf16>, vector<512x512xbf16>, vector<8x512xf32> -> vector<8x512xf32>
    %c0_9 = arith.constant 0 : index
    %c0_10 = arith.constant 0 : index
    %13 = vector.load %arg5[%c0_9, %c0_10] : memref<1x512xf32, #tpu.memory_space<vmem>>, vector<1x512xf32>
    %14 = vector.broadcast %13 : vector<1x512xf32> to vector<8x512xf32>
    %15 = arith.addf %12, %14 : vector<8x512xf32>
    %cst_11 = arith.constant 0.000000e+00 : f32
    %16 = vector.broadcast %cst_11 : f32 to vector<8x512xf32>
    %17 = arith.maximumf %15, %16 : vector<8x512xf32>
    %18 = arith.truncf %17 : vector<8x512xf32> to vector<8x512xbf16>
    %19 = vector.extract_strided_slice %9 {offsets = [0, 512], sizes = [8, 512], strides = [1, 1]} : vector<8x1024xbf16> to vector<8x512xbf16>
    %c0_12 = arith.constant 0 : index
    %c0_13 = arith.constant 0 : index
    %20 = vector.load %arg6[%c0_12, %c0_13] : memref<512x512xbf16, #tpu.memory_space<vmem>>, vector<512x512xbf16>
    %cst_14 = arith.constant dense<0.000000e+00> : vector<8x512xf32>
    %21 = tpu.matmul %19, %20, %cst_14 {dimension_numbers = #tpu.dot_dimension_numbers<[1], [0], [0], [1], [0, 0, 1, 1], [], []>} : vector<8x512xbf16>, vector<512x512xbf16>, vector<8x512xf32> -> vector<8x512xf32>
    %c0_15 = arith.constant 0 : index
    %c0_16 = arith.constant 0 : index
    %22 = vector.load %arg7[%c0_15, %c0_16] : memref<1x512xf32, #tpu.memory_space<vmem>>, vector<1x512xf32>
    %23 = vector.broadcast %22 : vector<1x512xf32> to vector<8x512xf32>
    %24 = arith.addf %21, %23 : vector<8x512xf32>
    %cst_17 = arith.constant 0.000000e+00 : f32
    %25 = vector.broadcast %cst_17 : f32 to vector<8x512xf32>
    %26 = arith.maximumf %24, %25 : vector<8x512xf32>
    %27 = arith.truncf %26 : vector<8x512xf32> to vector<8x512xbf16>
    %28 = tpu.concatenate %18, %27 in 1 : vector<8x512xbf16>, vector<8x512xbf16> -> vector<8x1024xbf16>
    %c0_18 = arith.constant 0 : index
    %c0_19 = arith.constant 0 : index
    %29 = vector.load %arg8[%c0_18, %c0_19] : memref<1024x128xbf16, #tpu.memory_space<vmem>>, vector<1024x128xbf16>
    %cst_20 = arith.constant dense<0.000000e+00> : vector<8x128xf32>
    %30 = tpu.matmul %28, %29, %cst_20 {dimension_numbers = #tpu.dot_dimension_numbers<[1], [0], [0], [1], [0, 0, 1, 1], [], []>} : vector<8x1024xbf16>, vector<1024x128xbf16>, vector<8x128xf32> -> vector<8x128xf32>
    %c0_21 = arith.constant 0 : index
    %c0_22 = arith.constant 0 : index
    %31 = vector.load %arg9[%c0_21, %c0_22] : memref<1x128xf32, #tpu.memory_space<vmem>>, vector<1x128xf32>
    %32 = vector.broadcast %31 : vector<1x128xf32> to vector<8x128xf32>
    %33 = arith.addf %30, %32 : vector<8x128xf32>
    %34 = arith.mulf %33, %33 : vector<8x128xf32>
    %cst_23 = arith.constant dense<0.000000e+00> : vector<8xf32>
    %35 = vector.multi_reduction <add>, %34, %cst_23 [1] : vector<8x128xf32> to vector<8xf32>
    %36 = math.sqrt %35 : vector<8xf32>
    %cst_24 = arith.constant -0.0202027075 : f32
    %37 = vector.broadcast %cst_24 : f32 to vector<8xf32>
    %38 = arith.mulf %36, %37 : vector<8xf32>
    %39 = math.exp %38 : vector<8xf32>
    %cst_25 = arith.constant 1.000000e+00 : f32
    %40 = vector.broadcast %cst_25 : f32 to vector<8xf32>
    %41 = arith.subf %40, %39 : vector<8xf32>
    %cst_26 = arith.constant -5.000000e+01 : f32
    %42 = vector.broadcast %cst_26 : f32 to vector<8xf32>
    %43 = arith.mulf %41, %42 : vector<8xf32>
    %44 = vector.shape_cast %43 : vector<8xf32> to vector<1x8xf32>
    %c0_27 = arith.constant 0 : index
    %c0_28 = arith.constant 0 : index
    %45 = vector.load %arg10[%c0_27, %c0_28] : memref<1x8xf32, #tpu.memory_space<vmem>>, vector<1x8xf32>
    tpu.vector_store %arg10[%c0_27, %c0_28], %44 {strides = array<i32>} : memref<1x8xf32, #tpu.memory_space<vmem>>, vector<1x8xf32>,
    return
  }
  func.func @transform_0(%arg0: i32) -> (i32, i32) {
    %c0_i32 = arith.constant 0 : i32
    %c0_i32_0 = arith.constant 0 : i32
    return %arg0, %c0_i32 : i32, i32
  }
  func.func @transform_1(%arg0: i32) -> (i32, i32) {
    %c0_i32 = arith.constant 0 : i32
    %c0_i32_0 = arith.constant 0 : i32
    %c0_i32_1 = arith.constant 0 : i32
    return %c0_i32, %c0_i32_0 : i32, i32
  }
  func.func @transform_2(%arg0: i32) -> (i32, i32) {
    %c0_i32 = arith.constant 0 : i32
    %c0_i32_0 = arith.constant 0 : i32
    %c0_i32_1 = arith.constant 0 : i32
    return %c0_i32, %c0_i32_0 : i32, i32
  }
  func.func @transform_3(%arg0: i32) -> (i32, i32) {
    %c0_i32 = arith.constant 0 : i32
    %c0_i32_0 = arith.constant 0 : i32
    %c0_i32_1 = arith.constant 0 : i32
    return %c0_i32, %c0_i32_0 : i32, i32
  }
  func.func @transform_4(%arg0: i32) -> (i32, i32) {
    %c0_i32 = arith.constant 0 : i32
    %c0_i32_0 = arith.constant 0 : i32
    %c0_i32_1 = arith.constant 0 : i32
    return %c0_i32, %c0_i32_0 : i32, i32
  }
  func.func @transform_5(%arg0: i32) -> (i32, i32) {
    %c0_i32 = arith.constant 0 : i32
    %c0_i32_0 = arith.constant 0 : i32
    %c0_i32_1 = arith.constant 0 : i32
    return %c0_i32, %c0_i32_0 : i32, i32
  }
  func.func @transform_6(%arg0: i32) -> (i32, i32) {
    %c0_i32 = arith.constant 0 : i32
    %c0_i32_0 = arith.constant 0 : i32
    %c0_i32_1 = arith.constant 0 : i32
    return %c0_i32, %c0_i32_0 : i32, i32
  }
  func.func @transform_7(%arg0: i32) -> (i32, i32) {
    %c0_i32 = arith.constant 0 : i32
    %c0_i32_0 = arith.constant 0 : i32
    %c0_i32_1 = arith.constant 0 : i32
    return %c0_i32, %c0_i32_0 : i32, i32
  }
  func.func @transform_8(%arg0: i32) -> (i32, i32) {
    %c0_i32 = arith.constant 0 : i32
    %c0_i32_0 = arith.constant 0 : i32
    %c0_i32_1 = arith.constant 0 : i32
    return %c0_i32, %c0_i32_0 : i32, i32
  }
  func.func @transform_9(%arg0: i32) -> (i32, i32) {
    %c0_i32 = arith.constant 0 : i32
    %c0_i32_0 = arith.constant 0 : i32
    return %c0_i32, %arg0 : i32, i32
  }
}

</mosaic_0001>

<llo_original>
// kernel: tpu_custom_call.1
$region0: #{tpu_custom_call.1}
  #allocation0 [shape = 'u32[]', space=smem, size = 0x4, offset = 0x4, fixed_abs, tag = 'smem constant byte address 0x4 - core index']
  #allocation1 [shape = 'u32[144,128]{1,0:T(1,128)}', space=vmem, size = 0x12000, scoped, tag = 'internal scratch']
  %s0 = inlined_call_operand.hbm [shape: f32[8,17], index: 0, kind: input, shape index: {}]
  %s1 = inlined_call_operand.hbm [shape: bf16[17,1024], index: 1, kind: input, shape index: {}]
  %s2 = inlined_call_operand.hbm [shape: f32[1,1024], index: 2, kind: input, shape index: {}]
  %s3 = inlined_call_operand.hbm [shape: bf16[512,512], index: 3, kind: input, shape index: {}]
  %s4 = inlined_call_operand.vmem [shape: f32[1,512], index: 4, kind: input, shape index: {}]
  %s5 = inlined_call_operand.hbm [shape: bf16[512,512], index: 5, kind: input, shape index: {}]
  %s6 = inlined_call_operand.vmem [shape: f32[1,512], index: 6, kind: input, shape index: {}]
  %s7 = inlined_call_operand.hbm [shape: bf16[1024,128], index: 7, kind: input, shape index: {}]
  %s8 = inlined_call_operand.vmem [shape: f32[1,128], index: 8, kind: input, shape index: {}]
  %s9 = inlined_call_operand.hbm [shape: f32[1,8], index: 9, kind: output, shape index: {}]
  %s10 = sld [smem:[#allocation0]]
  $region70: #{tpu_custom_call.1} parent=0
    _
  %s12 = ssub.s32 1, %s10
  %s13 = scalar_select 0, %s12, %s10
  $region1: #{tpu_custom_call.1} parent=0
    #allocation2 [shape = 'u8[4096]{0}', space=vmem, size = 0x1000, scoped, tag = 'input window, operand 0, single buffered']
    #allocation3 [shape = 's32[1]{0}', space=sflag, size = 0x4, scoped, tag = 'scoped memory for tpu_custom_call.1']
    #allocation4 [shape = 's32[1]{0}', space=sflag, size = 0x4, scoped, tag = 'scoped memory for tpu_custom_call.1']
    #allocation5 [shape = 'u8[49152]{0}', space=vmem, size = 0xc000, scoped, tag = 'input window, operand 1, single buffered']
    #allocation6 [shape = 's32[1]{0}', space=sflag, size = 0x4, scoped, tag = 'scoped memory for tpu_custom_call.1']
    #allocation7 [shape = 'u8[4096]{0}', space=vmem, size = 0x1000, scoped, tag = 'input window, operand 2, single buffered']
    #allocation8 [shape = 'u8[524288]{0}', space=vmem, size = 0x80000, scoped, tag = 'input window, operand 3, single buffered']
    #allocation9 [shape = 's32[1]{0}', space=sflag, size = 0x4, scoped, tag = 'scoped memory for tpu_custom_call.1']
    #allocation10 [shape = 'u8[524288]{0}', space=vmem, size = 0x80000, scoped, tag = 'input window, operand 5, single buffered']
    #allocation11 [shape = 'u8[262144]{0}', space=vmem, size = 0x40000, scoped, tag = 'input window, operand 7, single buffered']
    #allocation12 [shape = 's32[1]{0}', space=sflag, size = 0x4, scoped, tag = 'scoped memory for tpu_custom_call.1']
    #allocation13 [shape = 'u8[512]{0}', space=vmem, size = 0x400, scoped, tag = 'output window, operand 0, single buffered']
    %14 = vsyncpa [#allocation3], 0
    %15 = vsyncpa [#allocation6], 0
    %16 = vsyncpa [#allocation9], 0
    %17 = vsyncpa [#allocation12], 0
    %18 = vsyncpa [#allocation4], 0
    // Predicated region
    $region2: #{tpu_custom_call.1} parent=1 // pred_check
      _
    $region3: #{tpu_custom_call.1} parent=1 // pred_check_branch
      %20 = sbr.rel (0) target = $region5
    $region4: #{tpu_custom_call.1} parent=1 // pred_region
      %s22 = ssub.s32 128, 128
      %23 = vsyncadd [#allocation3], %s22
      %s25 = sshll.u32 [#allocation2], 4
      %s26 = int_to_ptr.vmem [resolvable:$true] %s25
      %28 = dma.hbm_to_vmem [thread:$0]  %s0, 128, %s26, [#allocation3]
    $region5: #{tpu_custom_call.1} parent=1 // pred_fallthru
      _
    // Predicated region
    $region6: #{tpu_custom_call.1} parent=1 // pred_check
      _
    $region7: #{tpu_custom_call.1} parent=1 // pred_check_branch
      %30 = sbr.rel (0) target = $region9
    $region8: #{tpu_custom_call.1} parent=1 // pred_region
      %s32 = ssub.s32 1536, 1536
      %33 = vsyncadd [#allocation6], %s32
      %s34 = sshll.u32 [#allocation5], 4
      %s35 = int_to_ptr.vmem [resolvable:$true] %s34
      %40 = dma.hbm_to_vmem [thread:$0]  %s1, 1536, %s35, [#allocation6], 512, 512, 32
    $region9: #{tpu_custom_call.1} parent=1 // pred_fallthru
      _
    // Predicated region
    $region10: #{tpu_custom_call.1} parent=1 // pred_check
      _
    $region11: #{tpu_custom_call.1} parent=1 // pred_check_branch
      %42 = sbr.rel (0) target = $region13
    $region12: #{tpu_custom_call.1} parent=1 // pred_region
      %s44 = ssub.s32 128, 128
      %45 = vsyncadd [#allocation6], %s44
      %s47 = sshll.u32 [#allocation7], 4
      %s48 = int_to_ptr.vmem [resolvable:$true] %s47
      %50 = dma.hbm_to_vmem [thread:$0]  %s2, 128, %s48, [#allocation6]
    $region13: #{tpu_custom_call.1} parent=1 // pred_fallthru
      _
    // Predicated region
    $region14: #{tpu_custom_call.1} parent=1 // pred_check
      _
    $region15: #{tpu_custom_call.1} parent=1 // pred_check_branch
      %52 = sbr.rel (0) target = $region17
    $region16: #{tpu_custom_call.1} parent=1 // pred_region
      %s54 = ssub.s32 16384, 16384
      %55 = vsyncadd [#allocation9], %s54
      %s56 = sshll.u32 [#allocation8], 4
      %s57 = int_to_ptr.vmem [resolvable:$true] %s56
      %62 = dma.hbm_to_vmem [thread:$0]  %s3, 16384, %s57, [#allocation9], 256, 256, 16
    $region17: #{tpu_custom_call.1} parent=1 // pred_fallthru
      _
    // Predicated region
    $region18: #{tpu_custom_call.1} parent=1 // pred_check
      _
    $region19: #{tpu_custom_call.1} parent=1 // pred_check_branch
      %64 = sbr.rel (0) target = $region21
    $region20: #{tpu_custom_call.1} parent=1 // pred_region
      _
    $region21: #{tpu_custom_call.1} parent=1 // pred_fallthru
      _
    // Predicated region
    $region22: #{tpu_custom_call.1} parent=1 // pred_check
      _
    $region23: #{tpu_custom_call.1} parent=1 // pred_check_branch
      %66 = sbr.rel (0) target = $region25
    $region24: #{tpu_custom_call.1} parent=1 // pred_region
      %s68 = ssub.s32 16384, 16384
      %69 = vsyncadd [#allocation9], %s68
      %s70 = sshll.u32 [#allocation10], 4
      %s71 = int_to_ptr.vmem [resolvable:$true] %s70
      %76 = dma.hbm_to_vmem [thread:$0]  %s5, 16384, %s71, [#allocation9], 256, 256, 16
    $region25: #{tpu_custom_call.1} parent=1 // pred_fallthru
      _
    // Predicated region
    $region26: #{tpu_custom_call.1} parent=1 // pred_check
      _
    $region27: #{tpu_custom_call.1} parent=1 // pred_check_branch
      %78 = sbr.rel (0) target = $region29
    $region28: #{tpu_custom_call.1} parent=1 // pred_region
      _
    $region29: #{tpu_custom_call.1} parent=1 // pred_fallthru
      _
    // Predicated region
    $region30: #{tpu_custom_call.1} parent=1 // pred_check
      _
    $region31: #{tpu_custom_call.1} parent=1 // pred_check_branch
      %80 = sbr.rel (0) target = $region33
    $region32: #{tpu_custom_call.1} parent=1 // pred_region
      %s82 = ssub.s32 8192, 8192
      %83 = vsyncadd [#allocation12], %s82
      %s84 = sshll.u32 [#allocation11], 4
      %s85 = int_to_ptr.vmem [resolvable:$true] %s84
      %90 = dma.hbm_to_vmem [thread:$0]  %s7, 8192, %s85, [#allocation12], 64, 64, 4
    $region33: #{tpu_custom_call.1} parent=1 // pred_fallthru
      _
    // Predicated region
    $region34: #{tpu_custom_call.1} parent=1 // pred_check
      _
    $region35: #{tpu_custom_call.1} parent=1 // pred_check_branch
      %92 = sbr.rel (0) target = $region37
    $region36: #{tpu_custom_call.1} parent=1 // pred_region
      _
    $region37: #{tpu_custom_call.1} parent=1 // pred_fallthru
      _
    // Predicated region
    $region38: #{tpu_custom_call.1} parent=1 // pred_check
      _
    $region39: #{tpu_custom_call.1} parent=1 // pred_check_branch
      %94 = sbr.rel (0) target = $region41
    $region40: #{tpu_custom_call.1} parent=1 // pred_region
      %95 = dma.done [#allocation3], 128
    $region41: #{tpu_custom_call.1} parent=1 // pred_fallthru
      _
    // Predicated region
    $region42: #{tpu_custom_call.1} parent=1 // pred_check
      _
    $region43: #{tpu_custom_call.1} parent=1 // pred_check_branch
      %97 = sbr.rel (0) target = $region45
    $region44: #{tpu_custom_call.1} parent=1 // pred_region
      %98 = dma.done [#allocation6], 1536
    $region45: #{tpu_custom_call.1} parent=1 // pred_fallthru
      _
    // Predicated region
    $region46: #{tpu_custom_call.1} parent=1 // pred_check
      _
    $region47: #{tpu_custom_call.1} parent=1 // pred_check_branch
      %100 = sbr.rel (0) target = $region49
    $region48: #{tpu_custom_call.1} parent=1 // pred_region
      %101 = dma.done [#allocation6], 128
    $region49: #{tpu_custom_call.1} parent=1 // pred_fallthru
      _
    // Predicated region
    $region50: #{tpu_custom_call.1} parent=1 // pred_check
      _
    $region51: #{tpu_custom_call.1} parent=1 // pred_check_branch
      %103 = sbr.rel (0) target = $region53
    $region52: #{tpu_custom_call.1} parent=1 // pred_region
      %104 = dma.done [#allocation9], 16384
    $region53: #{tpu_custom_call.1} parent=1 // pred_fallthru
      _
    // Predicated region
    $region54: #{tpu_custom_call.1} parent=1 // pred_check
      _
    $region55: #{tpu_custom_call.1} parent=1 // pred_check_branch
      %106 = sbr.rel (0) target = $region57
    $region56: #{tpu_custom_call.1} parent=1 // pred_region
      %107 = dma.done [#allocation9], 16384
    $region57: #{tpu_custom_call.1} parent=1 // pred_fallthru
      _
    // Predicated region
    $region58: #{tpu_custom_call.1} parent=1 // pred_check
      _
    $region59: #{tpu_custom_call.1} parent=1 // pred_check_branch
      %109 = sbr.rel (0) target = $region61
    $region60: #{tpu_custom_call.1} parent=1 // pred_region
      %110 = dma.done [#allocation12], 8192
    $region61: #{tpu_custom_call.1} parent=1 // pred_fallthru
      _
    %v112 = vld [vmem:[#allocation2] sm:$0xff]
    %v113 = vpack.c.bf16 %v112, %v112
    %v114 = vld [vmem:[#allocation5] sm:$0xff]
    %v115 = vld [vmem:[#allocation5 + $0x8] sm:$0xff]
    %v116 = vld [vmem:[#allocation5 + $0x10] sm:$0xff]
    %v117 = vld [vmem:[#allocation5 + $0x18] sm:$0xff]
    %v118 = vld [vmem:[#allocation5 + $0x20] sm:$0xff]
    %v119 = vld [vmem:[#allocation5 + $0x28] sm:$0xff]
    %v120 = vld [vmem:[#allocation5 + $0x30] sm:$0xff]
    %v121 = vld [vmem:[#allocation5 + $0x38] sm:$0xff]
    %v122 = vld [vmem:[#allocation5 + $0x40] sm:$0x11]
    %v123 = vld [vmem:[#allocation5 + $0x48] sm:$0x11]
    %v124 = vld [vmem:[#allocation5 + $0x50] sm:$0x11]
    %v125 = vld [vmem:[#allocation5 + $0x58] sm:$0x11]
    %v126 = vld [vmem:[#allocation7] sm:$0xff]
    %v128 = vlaneseq
    %v129 = vshrl.u32 %v128, 7
    %v130 = vsub.s32 0, %v129
    %v131 = vrot.slane %v126, %v130
    %v132 = vlaneseq
    %v133 = vshrl.u32 %v132, 7
    %v134 = vsub.s32 1, %v133
    %v135 = vrot.slane %v126, %v134
    %v136 = vlaneseq
    %v137 = vshrl.u32 %v136, 7
    %v138 = vsub.s32 2, %v137
    %v139 = vrot.slane %v126, %v138
    %v140 = vlaneseq
    %v141 = vshrl.u32 %v140, 7
    %v142 = vsub.s32 3, %v141
    %v143 = vrot.slane %v126, %v142
    %v144 = vlaneseq
    %v145 = vshrl.u32 %v144, 7
    %v146 = vsub.s32 4, %v145
    %v147 = vrot.slane %v126, %v146
    %v148 = vlaneseq
    %v149 = vshrl.u32 %v148, 7
    %v150 = vsub.s32 5, %v149
    %v151 = vrot.slane %v126, %v150
    %v152 = vlaneseq
    %v153 = vshrl.u32 %v152, 7
    %v154 = vsub.s32 6, %v153
    %v155 = vrot.slane %v126, %v154
    %v156 = vlaneseq
    %v157 = vshrl.u32 %v156, 7
    %v158 = vsub.s32 7, %v157
    %v159 = vrot.slane %v126, %v158
    %v180 = vunpack.c.l.b16 %v114
    %v181 = vunpack.c.h.b16 %v114
    %v182 = vunpack.c.l.b16 %v115
    %v183 = vunpack.c.h.b16 %v115
    %v184 = vunpack.c.l.b16 %v116
    %v185 = vunpack.c.h.b16 %v116
    %v186 = vunpack.c.l.b16 %v117
    %v187 = vunpack.c.h.b16 %v117
    %v188 = vunpack.c.l.b16 %v118
    %v189 = vunpack.c.h.b16 %v118
    %v190 = vunpack.c.l.b16 %v119
    %v191 = vunpack.c.h.b16 %v119
    %v192 = vunpack.c.l.b16 %v120
    %v193 = vunpack.c.h.b16 %v120
    %v194 = vunpack.c.l.b16 %v121
    %v195 = vunpack.c.h.b16 %v121
    %v196 = vunpack.c.l.b16 %v122
    %v197 = vunpack.c.h.b16 %v122
    %v198 = vunpack.c.l.b16 %v123
    %v199 = vunpack.c.h.b16 %v123
    %v200 = vunpack.c.l.b16 %v124
    %v201 = vunpack.c.h.b16 %v124
    %v202 = vunpack.c.l.b16 %v125
    %v203 = vunpack.c.h.b16 %v125
    %v204 = vpack.c.b16 %v188, %v180
    %v205 = vpack.c.b16 %v189, %v181
    %v206 = vpack.c.b16 %v190, %v182
    %v207 = vpack.c.b16 %v191, %v183
    %v208 = vpack.c.b16 %v192, %v184
    %v209 = vpack.c.b16 %v193, %v185
    %v210 = vpack.c.b16 %v194, %v186
    %v211 = vpack.c.b16 %v195, %v187
    %v212 = vpack.c.b16 %v196, %v196
    %v213 = vpack.c.b16 %v197, %v197
    %v214 = vpack.c.b16 %v198, %v198
    %v215 = vpack.c.b16 %v199, %v199
    %v216 = vpack.c.b16 %v200, %v200
    %v217 = vpack.c.b16 %v201, %v201
    %v218 = vpack.c.b16 %v202, %v202
    %v219 = vpack.c.b16 %v203, %v203
    %vm228 = vcmask 138240
    %v230 = vsel %vm228, %v113, 0
    %vm232 = vcmask 1040384
    %v233 = vsel 0, 4294967295, 65535
    %v234 = vsel %vm232, %v233, 0
    %v236 = vand.u32 %v212, %v234
    %v239 = vand.u32 %v213, %v234
    %v242 = vand.u32 %v214, %v234
    %v245 = vand.u32 %v215, %v234
    %v248 = vand.u32 %v216, %v234
    %v251 = vand.u32 %v217, %v234
    %v254 = vand.u32 %v218, %v234
    %v257 = vand.u32 %v219, %v234
    %259 = vmatprep.subr.bf16.mxu0 0
    %260 = vmatpush1.bf16.msra.mxu0 0
    %261 = vmatprep.subr.bf16.mxu0 0
    %262 = vmatpush1.bf16.msra.mxu0 0
    %263 = vmatprep.subr.bf16.mxu0 0
    %264 = vmatpush1.bf16.msra.mxu0 0
    %265 = vmatprep.subr.bf16.mxu0 0
    %266 = vmatpush1.bf16.msra.mxu0 0
    %267 = vmatprep.subr.bf16.mxu0 0
    %268 = vmatpush1.bf16.msra.mxu0 0
    %269 = vmatprep.subr.bf16.mxu0 0
    %270 = vmatpush1.bf16.msra.mxu0 0
    %271 = vmatprep.subr.bf16.mxu0 %v239
    %272 = vmatpush1.bf16.msra.mxu0 %v236
    %273 = vmatprep.subr.bf16.mxu0 %v205
    %274 = vmatpush1.bf16.msra.mxu0 %v204
    %275 = vmatprep.subr.bf16.mxu0 0
    %276 = vmatpush2.bf16.msra.mxu0 0
    %277 = vmatprep.subr.bf16.mxu0 0
    %278 = vmatpush2.bf16.msra.mxu0 0
    %279 = vmatprep.subr.bf16.mxu0 0
    %280 = vmatpush2.bf16.msra.mxu0 0
    %281 = vmatprep.subr.bf16.mxu0 0
    %282 = vmatpush2.bf16.msra.mxu0 0
    %283 = vmatprep.subr.bf16.mxu0 0
    %284 = vmatpush2.bf16.msra.mxu0 0
    %285 = vmatprep.subr.bf16.mxu0 0
    %286 = vmatpush2.bf16.msra.mxu0 0
    %287 = vmatprep.subr.bf16.mxu0 0
    %288 = vmatpush2.bf16.msra.mxu0 0
    %289 = vmatprep.subr.bf16.mxu0 0
    %290 = vmatpush2.bf16.msra.mxu0 0
    %291 = vmatprep.mubr.bf16.mxu0 0
    %292 = vmatmul.mubr.bf16.gmra.mxu0 %v230
    %v293 = vpop.f32.mrf.mxu0
    %v294 = vadd.f32 %v131, %v293
    %v295 = vpop.f32.mrf.mxu0
    %v296 = vadd.f32 %v135, %v295
    %v297 = vpop.f32.mrf.mxu0
    %v298 = vpop.f32.mrf.mxu0
    %299 = vdwg.mxu0
    %300 = vmatprep.subr.bf16.mxu0 0
    %301 = vmatpush1.bf16.msra.mxu0 0
    %302 = vmatprep.subr.bf16.mxu0 0
    %303 = vmatpush1.bf16.msra.mxu0 0
    %304 = vmatprep.subr.bf16.mxu0 0
    %305 = vmatpush1.bf16.msra.mxu0 0
    %306 = vmatprep.subr.bf16.mxu0 0
    %307 = vmatpush1.bf16.msra.mxu0 0
    %308 = vmatprep.subr.bf16.mxu0 0
    %309 = vmatpush1.bf16.msra.mxu0 0
    %310 = vmatprep.subr.bf16.mxu0 0
    %311 = vmatpush1.bf16.msra.mxu0 0
    %312 = vmatprep.subr.bf16.mxu0 %v245
    %313 = vmatpush1.bf16.msra.mxu0 %v242
    %314 = vmatprep.subr.bf16.mxu0 %v207
    %315 = vmatpush1.bf16.msra.mxu0 %v206
    %316 = vmatprep.subr.bf16.mxu0 0
    %317 = vmatpush2.bf16.msra.mxu0 0
    %318 = vmatprep.subr.bf16.mxu0 0
    %319 = vmatpush2.bf16.msra.mxu0 0
    %320 = vmatprep.subr.bf16.mxu0 0
    %321 = vmatpush2.bf16.msra.mxu0 0
    %322 = vmatprep.subr.bf16.mxu0 0
    %323 = vmatpush2.bf16.msra.mxu0 0
    %324 = vmatprep.subr.bf16.mxu0 0
    %325 = vmatpush2.bf16.msra.mxu0 0
    %326 = vmatprep.subr.bf16.mxu0 0
    %327 = vmatpush2.bf16.msra.mxu0 0
    %328 = vmatprep.subr.bf16.mxu0 0
    %329 = vmatpush2.bf16.msra.mxu0 0
    %330 = vmatprep.subr.bf16.mxu0 0
    %331 = vmatpush2.bf16.msra.mxu0 0
    %332 = vmatprep.mubr.bf16.mxu0 0
    %333 = vmatmul.mubr.bf16.gmra.mxu0 %v230
    %v334 = vpop.f32.mrf.mxu0
    %v335 = vadd.f32 %v139, %v334
    %v336 = vpop.f32.mrf.mxu0
    %v337 = vadd.f32 %v143, %v336
    %v338 = vpop.f32.mrf.mxu0
    %v339 = vpop.f32.mrf.mxu0
    %340 = vdwg.mxu0
    %341 = vmatprep.subr.bf16.mxu0 0
    %342 = vmatpush1.bf16.msra.mxu0 0
    %343 = vmatprep.subr.bf16.mxu0 0
    %344 = vmatpush1.bf16.msra.mxu0 0
    %345 = vmatprep.subr.bf16.mxu0 0
    %346 = vmatpush1.bf16.msra.mxu0 0
    %347 = vmatprep.subr.bf16.mxu0 0
    %348 = vmatpush1.bf16.msra.mxu0 0
    %349 = vmatprep.subr.bf16.mxu0 0
    %350 = vmatpush1.bf16.msra.mxu0 0
    %351 = vmatprep.subr.bf16.mxu0 0
    %352 = vmatpush1.bf16.msra.mxu0 0
    %353 = vmatprep.subr.bf16.mxu0 %v251
    %354 = vmatpush1.bf16.msra.mxu0 %v248
    %355 = vmatprep.subr.bf16.mxu0 %v209
    %356 = vmatpush1.bf16.msra.mxu0 %v208
    %357 = vmatprep.subr.bf16.mxu0 0
    %358 = vmatpush2.bf16.msra.mxu0 0
    %359 = vmatprep.subr.bf16.mxu0 0
    %360 = vmatpush2.bf16.msra.mxu0 0
    %361 = vmatprep.subr.bf16.mxu0 0
    %362 = vmatpush2.bf16.msra.mxu0 0
    %363 = vmatprep.subr.bf16.mxu0 0
    %364 = vmatpush2.bf16.msra.mxu0 0
    %365 = vmatprep.subr.bf16.mxu0 0
    %366 = vmatpush2.bf16.msra.mxu0 0
    %367 = vmatprep.subr.bf16.mxu0 0
    %368 = vmatpush2.bf16.msra.mxu0 0
    %369 = vmatprep.subr.bf16.mxu0 0
    %370 = vmatpush2.bf16.msra.mxu0 0
    %371 = vmatprep.subr.bf16.mxu0 0
    %372 = vmatpush2.bf16.msra.mxu0 0
    %373 = vmatprep.mubr.bf16.mxu0 0
    %374 = vmatmul.mubr.bf16.gmra.mxu0 %v230
    %v375 = vpop.f32.mrf.mxu0
    %v376 = vadd.f32 %v147, %v375
    %v377 = vpop.f32.mrf.mxu0
    %v378 = vadd.f32 %v151, %v377
    %v379 = vpop.f32.mrf.mxu0
    %v380 = vpop.f32.mrf.mxu0
    %381 = vdwg.mxu0
    %382 = vmatprep.subr.bf16.mxu0 0
    %383 = vmatpush1.bf16.msra.mxu0 0
    %384 = vmatprep.subr.bf16.mxu0 0
    %385 = vmatpush1.bf16.msra.mxu0 0
    %386 = vmatprep.subr.bf16.mxu0 0
    %387 = vmatpush1.bf16.msra.mxu0 0
    %388 = vmatprep.subr.bf16.mxu0 0
    %389 = vmatpush1.bf16.msra.mxu0 0
    %390 = vmatprep.subr.bf16.mxu0 0
    %391 = vmatpush1.bf16.msra.mxu0 0
    %392 = vmatprep.subr.bf16.mxu0 0
    %393 = vmatpush1.bf16.msra.mxu0 0
    %394 = vmatprep.subr.bf16.mxu0 %v257
    %395 = vmatpush1.bf16.msra.mxu0 %v254
    %396 = vmatprep.subr.bf16.mxu0 %v211
    %397 = vmatpush1.bf16.msra.mxu0 %v210
    %398 = vmatprep.subr.bf16.mxu0 0
    %399 = vmatpush2.bf16.msra.mxu0 0
    %400 = vmatprep.subr.bf16.mxu0 0
    %401 = vmatpush2.bf16.msra.mxu0 0
    %402 = vmatprep.subr.bf16.mxu0 0
    %403 = vmatpush2.bf16.msra.mxu0 0
    %404 = vmatprep.subr.bf16.mxu0 0
    %405 = vmatpush2.bf16.msra.mxu0 0
    %406 = vmatprep.subr.bf16.mxu0 0
    %407 = vmatpush2.bf16.msra.mxu0 0
    %408 = vmatprep.subr.bf16.mxu0 0
    %409 = vmatpush2.bf16.msra.mxu0 0
    %410 = vmatprep.subr.bf16.mxu0 0
    %411 = vmatpush2.bf16.msra.mxu0 0
    %412 = vmatprep.subr.bf16.mxu0 0
    %413 = vmatpush2.bf16.msra.mxu0 0
    %414 = vmatprep.mubr.bf16.mxu0 0
    %415 = vmatmul.mubr.bf16.gmra.mxu0 %v230
    %v416 = vpop.f32.mrf.mxu0
    %v417 = vadd.f32 %v155, %v416
    %v418 = vpop.f32.mrf.mxu0
    %v419 = vadd.f32 %v159, %v418
    %v420 = vpop.f32.mrf.mxu0
    %v421 = vpop.f32.mrf.mxu0
    %422 = vdwg.mxu0
    %v423 = vmax.f32 %v294, 0.0
    %v424 = vmax.f32 %v296, 0.0
    %v425 = vmax.f32 %v335, 0.0
    %v426 = vmax.f32 %v337, 0.0
    %v427 = vmax.f32 %v376, 0.0
    %v428 = vmax.f32 %v378, 0.0
    %v429 = vmax.f32 %v417, 0.0
    %v430 = vmax.f32 %v419, 0.0
    %v431 = vpack.c.bf16 %v423, %v423
    %v432 = vpack.c.bf16 %v424, %v424
    %v433 = vpack.c.bf16 %v425, %v425
    %v434 = vpack.c.bf16 %v426, %v426
    %v435 = vpack.c.bf16 %v427, %v427
    %v436 = vpack.c.bf16 %v428, %v428
    %v437 = vpack.c.bf16 %v429, %v429
    %v438 = vpack.c.bf16 %v430, %v430
    %v439 = vld [vmem:[#allocation8] sm:$0xff]
    %v440 = vld [vmem:[#allocation8 + $0x8] sm:$0xff]
    %v441 = vld [vmem:[#allocation8 + $0x10] sm:$0xff]
    %v442 = vld [vmem:[#allocation8 + $0x18] sm:$0xff]
    %v443 = vld [vmem:[#allocation8 + $0x20] sm:$0xff]
    %v444 = vld [vmem:[#allocation8 + $0x28] sm:$0xff]
    %v445 = vld [vmem:[#allocation8 + $0x30] sm:$0xff]
    %v446 = vld [vmem:[#allocation8 + $0x38] sm:$0xff]
    %v447 = vld [vmem:[#allocation8 + $0x40] sm:$0xff]
    %v448 = vld [vmem:[#allocation8 + $0x48] sm:$0xff]
    %v449 = vld [vmem:[#allocation8 + $0x50] sm:$0xff]
    %v450 = vld [vmem:[#allocation8 + $0x58] sm:$0xff]
    %v451 = vld [vmem:[#allocation8 + $0x60] sm:$0xff]
    %v452 = vld [vmem:[#allocation8 + $0x68] sm:$0xff]
    %v453 = vld [vmem:[#allocation8 + $0x70] sm:$0xff]
    %v454 = vld [vmem:[#allocation8 + $0x78] sm:$0xff]
    %v455 = vld [vmem:[#allocation8 + $0x80] sm:$0xff]
    %v456 = vld [vmem:[#allocation8 + $0x88] sm:$0xff]
    %v457 = vld [vmem:[#allocation8 + $0x90] sm:$0xff]
    %v458 = vld [vmem:[#allocation8 + $0x98] sm:$0xff]
    %v459 = vld [vmem:[#allocation8 + $0xa0] sm:$0xff]
    %v460 = vld [vmem:[#allocation8 + $0xa8] sm:$0xff]
    %v461 = vld [vmem:[#allocation8 + $0xb0] sm:$0xff]
    %v462 = vld [vmem:[#allocation8 + $0xb8] sm:$0xff]
    %v463 = vld [vmem:[#allocation8 + $0xc0] sm:$0xff]
    %v464 = vld [vmem:[#allocation8 + $0xc8] sm:$0xff]
    %v465 = vld [vmem:[#allocation8 + $0xd0] sm:$0xff]
    %v466 = vld [vmem:[#allocation8 + $0xd8] sm:$0xff]
    %v467 = vld [vmem:[#allocation8 + $0xe0] sm:$0xff]
    %v468 = vld [vmem:[#allocation8 + $0xe8] sm:$0xff]
    %v469 = vld [vmem:[#allocation8 + $0xf0] sm:$0xff]
    %v470 = vld [vmem:[#allocation8 + $0xf8] sm:$0xff]
    %v471 = vld [vmem:[#allocation8 + $0x100] sm:$0xff]
    %v472 = vld [vmem:[#allocation8 + $0x108] sm:$0xff]
    %v473 = vld [vmem:[#allocation8 + $0x110] sm:$0xff]
    %v474 = vld [vmem:[#allocation8 + $0x118] sm:$0xff]
    %v475 = vld [vmem:[#allocation8 + $0x120] sm:$0xff]
    %v476 = vld [vmem:[#allocation8 + $0x128] sm:$0xff]
    %v477 = vld [vmem:[#allocation8 + $0x130] sm:$0xff]
    %v478 = vld [vmem:[#allocation8 + $0x138] sm:$0xff]
    %v479 = vld [vmem:[#allocation8 + $0x140] sm:$0xff]
    %v480 = vld [vmem:[#allocation8 + $0x148] sm:$0xff]
    %v481 = vld [vmem:[#allocation8 + $0x150] sm:$0xff]
    %v482 = vld [vmem:[#allocation8 + $0x158] sm:$0xff]
    %v483 = vld [vmem:[#allocation8 + $0x160] sm:$0xff]
    %v484 = vld [vmem:[#allocation8 + $0x168] sm:$0xff]
    %v485 = vld [vmem:[#allocation8 + $0x170] sm:$0xff]
    %v486 = vld [vmem:[#allocation8 + $0x178] sm:$0xff]
    %v487 = vld [vmem:[#allocation8 + $0x180] sm:$0xff]
    %v488 = vld [vmem:[#allocation8 + $0x188] sm:$0xff]
    %v489 = vld [vmem:[#allocation8 + $0x190] sm:$0xff]
    %v490 = vld [vmem:[#allocation8 + $0x198] sm:$0xff]
    %v491 = vld [vmem:[#allocation8 + $0x1a0] sm:$0xff]
    %v492 = vld [vmem:[#allocation8 + $0x1a8] sm:$0xff]
    %v493 = vld [vmem:[#allocation8 + $0x1b0] sm:$0xff]
    %v494 = vld [vmem:[#allocation8 + $0x1b8] sm:$0xff]
    %v495 = vld [vmem:[#allocation8 + $0x1c0] sm:$0xff]
    %v496 = vld [vmem:[#allocation8 + $0x1c8] sm:$0xff]
    %v497 = vld [vmem:[#allocation8 + $0x1d0] sm:$0xff]
    %v498 = vld [vmem:[#allocation8 + $0x1d8] sm:$0xff]
    %v499 = vld [vmem:[#allocation8 + $0x1e0] sm:$0xff]
    %v500 = vld [vmem:[#allocation8 + $0x1e8] sm:$0xff]
    %v501 = vld [vmem:[#allocation8 + $0x1f0] sm:$0xff]
    %v502 = vld [vmem:[#allocation8 + $0x1f8] sm:$0xff]
    %v503 = vld [vmem:[#allocation8 + $0x200] sm:$0xff]
    %v504 = vld [vmem:[#allocation8 + $0x208] sm:$0xff]
    %v505 = vld [vmem:[#allocation8 + $0x210] sm:$0xff]
    %v506 = vld [vmem:[#allocation8 + $0x218] sm:$0xff]
    %v507 = vld [vmem:[#allocation8 + $0x220] sm:$0xff]
    %v508 = vld [vmem:[#allocation8 + $0x228] sm:$0xff]
    %v509 = vld [vmem:[#allocation8 + $0x230] sm:$0xff]
    %v510 = vld [vmem:[#allocation8 + $0x238] sm:$0xff]
    %v511 = vld [vmem:[#allocation8 + $0x240] sm:$0xff]
    %v512 = vld [vmem:[#allocation8 + $0x248] sm:$0xff]
    %v513 = vld [vmem:[#allocation8 + $0x250] sm:$0xff]
    %v514 = vld [vmem:[#allocation8 + $0x258] sm:$0xff]
    %v515 = vld [vmem:[#allocation8 + $0x260] sm:$0xff]
    %v516 = vld [vmem:[#allocation8 + $0x268] sm:$0xff]
    %v517 = vld [vmem:[#allocation8 + $0x270] sm:$0xff]
    %v518 = vld [vmem:[#allocation8 + $0x278] sm:$0xff]
    %v519 = vld [vmem:[#allocation8 + $0x280] sm:$0xff]
    %v520 = vld [vmem:[#allocation8 + $0x288] sm:$0xff]
    %v521 = vld [vmem:[#allocation8 + $0x290] sm:$0xff]
    %v522 = vld [vmem:[#allocation8 + $0x298] sm:$0xff]
    %v523 = vld [vmem:[#allocation8 + $0x2a0] sm:$0xff]
    %v524 = vld [vmem:[#allocation8 + $0x2a8] sm:$0xff]
    %v525 = vld [vmem:[#allocation8 + $0x2b0] sm:$0xff]
    %v526 = vld [vmem:[#allocation8 + $0x2b8] sm:$0xff]
    %v527 = vld [vmem:[#allocation8 + $0x2c0] sm:$0xff]
    %v528 = vld [vmem:[#allocation8 + $0x2c8] sm:$0xff]
    %v529 = vld [vmem:[#allocation8 + $0x2d0] sm:$0xff]
    %v530 = vld [vmem:[#allocation8 + $0x2d8] sm:$0xff]
    %v531 = vld [vmem:[#allocation8 + $0x2e0] sm:$0xff]
    %v532 = vld [vmem:[#allocation8 + $0x2e8] sm:$0xff]
    %v533 = vld [vmem:[#allocation8 + $0x2f0] sm:$0xff]
    %v534 = vld [vmem:[#allocation8 + $0x2f8] sm:$0xff]
    %v535 = vld [vmem:[#allocation8 + $0x300] sm:$0xff]
    %v536 = vld [vmem:[#allocation8 + $0x308] sm:$0xff]
    %v537 = vld [vmem:[#allocation8 + $0x310] sm:$0xff]
    %v538 = vld [vmem:[#allocation8 + $0x318] sm:$0xff]
    %v539 = vld [vmem:[#allocation8 + $0x320] sm:$0xff]
    %v540 = vld [vmem:[#allocation8 + $0x328] sm:$0xff]
    %v541 = vld [vmem:[#allocation8 + $0x330] sm:$0xff]
    %v542 = vld [vmem:[#allocation8 + $0x338] sm:$0xff]
    %v543 = vld [vmem:[#allocation8 + $0x340] sm:$0xff]
    %v544 = vld [vmem:[#allocation8 + $0x348] sm:$0xff]
    %v545 = vld [vmem:[#allocation8 + $0x350] sm:$0xff]
    %v546 = vld [vmem:[#allocation8 + $0x358] sm:$0xff]
    %v547 = vld [vmem:[#allocation8 + $0x360] sm:$0xff]
    %v548 = vld [vmem:[#allocation8 + $0x368] sm:$0xff]
    %v549 = vld [vmem:[#allocation8 + $0x370] sm:$0xff]
    %v550 = vld [vmem:[#allocation8 + $0x378] sm:$0xff]
    %v551 = vld [vmem:[#allocation8 + $0x380] sm:$0xff]
    %v552 = vld [vmem:[#allocation8 + $0x388] sm:$0xff]
    %v553 = vld [vmem:[#allocation8 + $0x390] sm:$0xff]
    %v554 = vld [vmem:[#allocation8 + $0x398] sm:$0xff]
    %v555 = vld [vmem:[#allocation8 + $0x3a0] sm:$0xff]
    %v556 = vld [vmem:[#allocation8 + $0x3a8] sm:$0xff]
    %v557 = vld [vmem:[#allocation8 + $0x3b0] sm:$0xff]
    %v558 = vld [vmem:[#allocation8 + $0x3b8] sm:$0xff]
    %v559 = vld [vmem:[#allocation8 + $0x3c0] sm:$0xff]
    %v560 = vld [vmem:[#allocation8 + $0x3c8] sm:$0xff]
    %v561 = vld [vmem:[#allocation8 + $0x3d0] sm:$0xff]
    %v562 = vld [vmem:[#allocation8 + $0x3d8] sm:$0xff]
    %v563 = vld [vmem:[#allocation8 + $0x3e0] sm:$0xff]
    %v564 = vld [vmem:[#allocation8 + $0x3e8] sm:$0xff]
    %v565 = vld [vmem:[#allocation8 + $0x3f0] sm:$0xff]
    %v566 = vld [vmem:[#allocation8 + $0x3f8] sm:$0xff]
    %v567 = vld [vmem:[%s4] sm:$0xf]
    %v569 = vlaneseq
    %v570 = vshrl.u32 %v569, 7
    %v571 = vsub.s32 0, %v570
    %v572 = vrot.slane %v567, %v571
    %v573 = vlaneseq
    %v574 = vshrl.u32 %v573, 7
    %v575 = vsub.s32 1, %v574
    %v576 = vrot.slane %v567, %v575
    %v577 = vlaneseq
    %v578 = vshrl.u32 %v577, 7
    %v579 = vsub.s32 2, %v578
    %v580 = vrot.slane %v567, %v579
    %v581 = vlaneseq
    %v582 = vshrl.u32 %v581, 7
    %v583 = vsub.s32 3, %v582
    %v584 = vrot.slane %v567, %v583
    %v717 = vunpack.c.l.b16 %v439
    %v718 = vunpack.c.h.b16 %v439
    %v719 = vunpack.c.l.b16 %v440
    %v720 = vunpack.c.h.b16 %v440
    %v721 = vunpack.c.l.b16 %v441
    %v722 = vunpack.c.h.b16 %v441
    %v723 = vunpack.c.l.b16 %v442
    %v724 = vunpack.c.h.b16 %v442
    %v725 = vunpack.c.l.b16 %v443
    %v726 = vunpack.c.h.b16 %v443
    %v727 = vunpack.c.l.b16 %v444
    %v728 = vunpack.c.h.b16 %v444
    %v729 = vunpack.c.l.b16 %v445
    %v730 = vunpack.c.h.b16 %v445
    %v731 = vunpack.c.l.b16 %v446
    %v732 = vunpack.c.h.b16 %v446
    %v733 = vunpack.c.l.b16 %v447
    %v734 = vunpack.c.h.b16 %v447
    %v735 = vunpack.c.l.b16 %v448
    %v736 = vunpack.c.h.b16 %v448
    %v737 = vunpack.c.l.b16 %v449
    %v738 = vunpack.c.h.b16 %v449
    %v739 = vunpack.c.l.b16 %v450
    %v740 = vunpack.c.h.b16 %v450
    %v741 = vunpack.c.l.b16 %v451
    %v742 = vunpack.c.h.b16 %v451
    %v743 = vunpack.c.l.b16 %v452
    %v744 = vunpack.c.h.b16 %v452
    %v745 = vunpack.c.l.b16 %v453
    %v746 = vunpack.c.h.b16 %v453
    %v747 = vunpack.c.l.b16 %v454
    %v748 = vunpack.c.h.b16 %v454
    %v749 = vunpack.c.l.b16 %v455
    %v750 = vunpack.c.h.b16 %v455
    %v751 = vunpack.c.l.b16 %v456
    %v752 = vunpack.c.h.b16 %v456
    %v753 = vunpack.c.l.b16 %v457
    %v754 = vunpack.c.h.b16 %v457
    %v755 = vunpack.c.l.b16 %v458
    %v756 = vunpack.c.h.b16 %v458
    %v757 = vunpack.c.l.b16 %v459
    %v758 = vunpack.c.h.b16 %v459
    %v759 = vunpack.c.l.b16 %v460
    %v760 = vunpack.c.h.b16 %v460
    %v761 = vunpack.c.l.b16 %v461
    %v762 = vunpack.c.h.b16 %v461
    %v763 = vunpack.c.l.b16 %v462
    %v764 = vunpack.c.h.b16 %v462
    %v765 = vunpack.c.l.b16 %v463
    %v766 = vunpack.c.h.b16 %v463
    %v767 = vunpack.c.l.b16 %v464
    %v768 = vunpack.c.h.b16 %v464
    %v769 = vunpack.c.l.b16 %v465
    %v770 = vunpack.c.h.b16 %v465
    %v771 = vunpack.c.l.b16 %v466
    %v772 = vunpack.c.h.b16 %v466
    %v773 = vunpack.c.l.b16 %v467
    %v774 = vunpack.c.h.b16 %v467
    %v775 = vunpack.c.l.b16 %v468
    %v776 = vunpack.c.h.b16 %v468
    %v777 = vunpack.c.l.b16 %v469
    %v778 = vunpack.c.h.b16 %v469
    %v779 = vunpack.c.l.b16 %v470
    %v780 = vunpack.c.h.b16 %v470
    %v781 = vunpack.c.l.b16 %v471
    %v782 = vunpack.c.h.b16 %v471
    %v783 = vunpack.c.l.b16 %v472
    %v784 = vunpack.c.h.b16 %v472
    %v785 = vunpack.c.l.b16 %v473
    %v786 = vunpack.c.h.b16 %v473
    %v787 = vunpack.c.l.b16 %v474
    %v788 = vunpack.c.h.b16 %v474
    %v789 = vunpack.c.l.b16 %v475
    %v790 = vunpack.c.h.b16 %v475
    %v791 = vunpack.c.l.b16 %v476
    %v792 = vunpack.c.h.b16 %v476
    %v793 = vunpack.c.l.b16 %v477
    %v794 = vunpack.c.h.b16 %v477
    %v795 = vunpack.c.l.b16 %v478
    %v796 = vunpack.c.h.b16 %v478
    %v797 = vunpack.c.l.b16 %v479
    %v798 = vunpack.c.h.b16 %v479
    %v799 = vunpack.c.l.b16 %v480
    %v800 = vunpack.c.h.b16 %v480
    %v801 = vunpack.c.l.b16 %v481
    %v802 = vunpack.c.h.b16 %v481
    %v803 = vunpack.c.l.b16 %v482
    %v804 = vunpack.c.h.b16 %v482
    %v805 = vunpack.c.l.b16 %v483
    %v806 = vunpack.c.h.b16 %v483
    %v807 = vunpack.c.l.b16 %v484
    %v808 = vunpack.c.h.b16 %v484
    %v809 = vunpack.c.l.b16 %v485
    %v810 = vunpack.c.h.b16 %v485
    %v811 = vunpack.c.l.b16 %v486
    %v812 = vunpack.c.h.b16 %v486
    %v813 = vunpack.c.l.b16 %v487
    %v814 = vunpack.c.h.b16 %v487
    %v815 = vunpack.c.l.b16 %v488
    %v816 = vunpack.c.h.b16 %v488
    %v817 = vunpack.c.l.b16 %v489
    %v818 = vunpack.c.h.b16 %v489
    %v819 = vunpack.c.l.b16 %v490
    %v820 = vunpack.c.h.b16 %v490
    %v821 = vunpack.c.l.b16 %v491
    %v822 = vunpack.c.h.b16 %v491
    %v823 = vunpack.c.l.b16 %v492
    %v824 = vunpack.c.h.b16 %v492
    %v825 = vunpack.c.l.b16 %v493
    %v826 = vunpack.c.h.b16 %v493
    %v827 = vunpack.c.l.b16 %v494
    %v828 = vunpack.c.h.b16 %v494
    %v829 = vunpack.c.l.b16 %v495
    %v830 = vunpack.c.h.b16 %v495
    %v831 = vunpack.c.l.b16 %v496
    %v832 = vunpack.c.h.b16 %v496
    %v833 = vunpack.c.l.b16 %v497
    %v834 = vunpack.c.h.b16 %v497
    %v835 = vunpack.c.l.b16 %v498
    %v836 = vunpack.c.h.b16 %v498
    %v837 = vunpack.c.l.b16 %v499
    %v838 = vunpack.c.h.b16 %v499
    %v839 = vunpack.c.l.b16 %v500
    %v840 = vunpack.c.h.b16 %v500
    %v841 = vunpack.c.l.b16 %v501
    %v842 = vunpack.c.h.b16 %v501
    %v843 = vunpack.c.l.b16 %v502
    %v844 = vunpack.c.h.b16 %v502
    %v845 = vunpack.c.l.b16 %v503
    %v846 = vunpack.c.h.b16 %v503
    %v847 = vunpack.c.l.b16 %v504
    %v848 = vunpack.c.h.b16 %v504
    %v849 = vunpack.c.l.b16 %v505
    %v850 = vunpack.c.h.b16 %v505
    %v851 = vunpack.c.l.b16 %v506
    %v852 = vunpack.c.h.b16 %v506
    %v853 = vunpack.c.l.b16 %v507
    %v854 = vunpack.c.h.b16 %v507
    %v855 = vunpack.c.l.b16 %v508
    %v856 = vunpack.c.h.b16 %v508
    %v857 = vunpack.c.l.b16 %v509
    %v858 = vunpack.c.h.b16 %v509
    %v859 = vunpack.c.l.b16 %v510
    %v860 = vunpack.c.h.b16 %v510
    %v861 = vunpack.c.l.b16 %v511
    %v862 = vunpack.c.h.b16 %v511
    %v863 = vunpack.c.l.b16 %v512
    %v864 = vunpack.c.h.b16 %v512
    %v865 = vunpack.c.l.b16 %v513
    %v866 = vunpack.c.h.b16 %v513
    %v867 = vunpack.c.l.b16 %v514
    %v868 = vunpack.c.h.b16 %v514
    %v869 = vunpack.c.l.b16 %v515
    %v870 = vunpack.c.h.b16 %v515
    %v871 = vunpack.c.l.b16 %v516
    %v872 = vunpack.c.h.b16 %v516
    %v873 = vunpack.c.l.b16 %v517
    %v874 = vunpack.c.h.b16 %v517
    %v875 = vunpack.c.l.b16 %v518
    %v876 = vunpack.c.h.b16 %v518
    %v877 = vunpack.c.l.b16 %v519
    %v878 = vunpack.c.h.b16 %v519
    %v879 = vunpack.c.l.b16 %v520
    %v880 = vunpack.c.h.b16 %v520
    %v881 = vunpack.c.l.b16 %v521
    %v882 = vunpack.c.h.b16 %v521
    %v883 = vunpack.c.l.b16 %v522
    %v884 = vunpack.c.h.b16 %v522
    %v885 = vunpack.c.l.b16 %v523
    %v886 = vunpack.c.h.b16 %v523
    %v887 = vunpack.c.l.b16 %v524
    %v888 = vunpack.c.h.b16 %v524
    %v889 = vunpack.c.l.b16 %v525
    %v890 = vunpack.c.h.b16 %v525
    %v891 = vunpack.c.l.b16 %v526
    %v892 = vunpack.c.h.b16 %v526
    %v893 = vunpack.c.l.b16 %v527
    %v894 = vunpack.c.h.b16 %v527
    %v895 = vunpack.c.l.b16 %v528
    %v896 = vunpack.c.h.b16 %v528
    %v897 = vunpack.c.l.b16 %v529
    %v898 = vunpack.c.h.b16 %v529
    %v899 = vunpack.c.l.b16 %v530
    %v900 = vunpack.c.h.b16 %v530
    %v901 = vunpack.c.l.b16 %v531
    %v902 = vunpack.c.h.b16 %v531
    %v903 = vunpack.c.l.b16 %v532
    %v904 = vunpack.c.h.b16 %v532
    %v905 = vunpack.c.l.b16 %v533
    %v906 = vunpack.c.h.b16 %v533
    %v907 = vunpack.c.l.b16 %v534
    %v908 = vunpack.c.h.b16 %v534
    %v909 = vunpack.c.l.b16 %v535
    %v910 = vunpack.c.h.b16 %v535
    %v911 = vunpack.c.l.b16 %v536
    %v912 = vunpack.c.h.b16 %v536
    %v913 = vunpack.c.l.b16 %v537
    %v914 = vunpack.c.h.b16 %v537
    %v915 = vunpack.c.l.b16 %v538
    %v916 = vunpack.c.h.b16 %v538
    %v917 = vunpack.c.l.b16 %v539
    %v918 = vunpack.c.h.b16 %v539
    %v919 = vunpack.c.l.b16 %v540
    %v920 = vunpack.c.h.b16 %v540
    %v921 = vunpack.c.l.b16 %v541
    %v922 = vunpack.c.h.b16 %v541
    %v923 = vunpack.c.l.b16 %v542
    %v924 = vunpack.c.h.b16 %v542
    %v925 = vunpack.c.l.b16 %v543
    %v926 = vunpack.c.h.b16 %v543
    %v927 = vunpack.c.l.b16 %v544
    %v928 = vunpack.c.h.b16 %v544
    %v929 = vunpack.c.l.b16 %v545
    %v930 = vunpack.c.h.b16 %v545
    %v931 = vunpack.c.l.b16 %v546
    %v932 = vunpack.c.h.b16 %v546
    %v933 = vunpack.c.l.b16 %v547
    %v934 = vunpack.c.h.b16 %v547
    %v935 = vunpack.c.l.b16 %v548
    %v936 = vunpack.c.h.b16 %v548
    %v937 = vunpack.c.l.b16 %v549
    %v938 = vunpack.c.h.b16 %v549
    %v939 = vunpack.c.l.b16 %v550
    %v940 = vunpack.c.h.b16 %v550
    %v941 = vunpack.c.l.b16 %v551
    %v942 = vunpack.c.h.b16 %v551
    %v943 = vunpack.c.l.b16 %v552
    %v944 = vunpack.c.h.b16 %v552
    %v945 = vunpack.c.l.b16 %v553
    %v946 = vunpack.c.h.b16 %v553
    %v947 = vunpack.c.l.b16 %v554
    %v948 = vunpack.c.h.b16 %v554
    %v949 = vunpack.c.l.b16 %v555
    %v950 = vunpack.c.h.b16 %v555
    %v951 = vunpack.c.l.b16 %v556
    %v952 = vunpack.c.h.b16 %v556
    %v953 = vunpack.c.l.b16 %v557
    %v954 = vunpack.c.h.b16 %v557
    %v955 = vunpack.c.l.b16 %v558
    %v956 = vunpack.c.h.b16 %v558
    %v957 = vunpack.c.l.b16 %v559
    %v958 = vunpack.c.h.b16 %v559
    %v959 = vunpack.c.l.b16 %v560
    %v960 = vunpack.c.h.b16 %v560
    %v961 = vunpack.c.l.b16 %v561
    %v962 = vunpack.c.h.b16 %v561
    %v963 = vunpack.c.l.b16 %v562
    %v964 = vunpack.c.h.b16 %v562
    %v965 = vunpack.c.l.b16 %v563
    %v966 = vunpack.c.h.b16 %v563
    %v967 = vunpack.c.l.b16 %v564
    %v968 = vunpack.c.h.b16 %v564
    %v969 = vunpack.c.l.b16 %v565
    %v970 = vunpack.c.h.b16 %v565
    %v971 = vunpack.c.l.b16 %v566
    %v972 = vunpack.c.h.b16 %v566
    %v973 = vpack.c.b16 %v721, %v717
    %v974 = vpack.c.b16 %v722, %v718
    %v975 = vpack.c.b16 %v723, %v719
    %v976 = vpack.c.b16 %v724, %v720
    %v977 = vpack.c.b16 %v729, %v725
    %v978 = vpack.c.b16 %v730, %v726
    %v979 = vpack.c.b16 %v731, %v727
    %v980 = vpack.c.b16 %v732, %v728
    %v981 = vpack.c.b16 %v737, %v733
    %v982 = vpack.c.b16 %v738, %v734
    %v983 = vpack.c.b16 %v739, %v735
    %v984 = vpack.c.b16 %v740, %v736
    %v985 = vpack.c.b16 %v745, %v741
    %v986 = vpack.c.b16 %v746, %v742
    %v987 = vpack.c.b16 %v747, %v743
    %v988 = vpack.c.b16 %v748, %v744
    %v989 = vpack.c.b16 %v753, %v749
    %v990 = vpack.c.b16 %v754, %v750
    %v991 = vpack.c.b16 %v755, %v751
    %v992 = vpack.c.b16 %v756, %v752
    %v993 = vpack.c.b16 %v761, %v757
    %v994 = vpack.c.b16 %v762, %v758
    %v995 = vpack.c.b16 %v763, %v759
    %v996 = vpack.c.b16 %v764, %v760
    %v997 = vpack.c.b16 %v769, %v765
    %v998 = vpack.c.b16 %v770, %v766
    %v999 = vpack.c.b16 %v771, %v767
    %v1000 = vpack.c.b16 %v772, %v768
    %v1001 = vpack.c.b16 %v777, %v773
    %v1002 = vpack.c.b16 %v778, %v774
    %v1003 = vpack.c.b16 %v779, %v775
    %v1004 = vpack.c.b16 %v780, %v776
    %v1005 = vpack.c.b16 %v785, %v781
    %v1006 = vpack.c.b16 %v786, %v782
    %v1007 = vpack.c.b16 %v787, %v783
    %v1008 = vpack.c.b16 %v788, %v784
    %v1009 = vpack.c.b16 %v793, %v789
    %v1010 = vpack.c.b16 %v794, %v790
    %v1011 = vpack.c.b16 %v795, %v791
    %v1012 = vpack.c.b16 %v796, %v792
    %v1013 = vpack.c.b16 %v801, %v797
    %v1014 = vpack.c.b16 %v802, %v798
    %v1015 = vpack.c.b16 %v803, %v799
    %v1016 = vpack.c.b16 %v804, %v800
    %v1017 = vpack.c.b16 %v809, %v805
    %v1018 = vpack.c.b16 %v810, %v806
    %v1019 = vpack.c.b16 %v811, %v807
    %v1020 = vpack.c.b16 %v812, %v808
    %v1021 = vpack.c.b16 %v817, %v813
    %v1022 = vpack.c.b16 %v818, %v814
    %v1023 = vpack.c.b16 %v819, %v815
    %v1024 = vpack.c.b16 %v820, %v816
    %v1025 = vpack.c.b16 %v825, %v821
    %v1026 = vpack.c.b16 %v826, %v822
    %v1027 = vpack.c.b16 %v827, %v823
    %v1028 = vpack.c.b16 %v828, %v824
    %v1029 = vpack.c.b16 %v833, %v829
    %v1030 = vpack.c.b16 %v834, %v830
    %v1031 = vpack.c.b16 %v835, %v831
    %v1032 = vpack.c.b16 %v836, %v832
    %v1033 = vpack.c.b16 %v841, %v837
    %v1034 = vpack.c.b16 %v842, %v838
    %v1035 = vpack.c.b16 %v843, %v839
    %v1036 = vpack.c.b16 %v844, %v840
    %v1037 = vpack.c.b16 %v849, %v845
    %v1038 = vpack.c.b16 %v850, %v846
    %v1039 = vpack.c.b16 %v851, %v847
    %v1040 = vpack.c.b16 %v852, %v848
    %v1041 = vpack.c.b16 %v857, %v853
    %v1042 = vpack.c.b16 %v858, %v854
    %v1043 = vpack.c.b16 %v859, %v855
    %v1044 = vpack.c.b16 %v860, %v856
    %v1045 = vpack.c.b16 %v865, %v861
    %v1046 = vpack.c.b16 %v866, %v862
    %v1047 = vpack.c.b16 %v867, %v863
    %v1048 = vpack.c.b16 %v868, %v864
    %v1049 = vpack.c.b16 %v873, %v869
    %v1050 = vpack.c.b16 %v874, %v870
    %v1051 = vpack.c.b16 %v875, %v871
    %v1052 = vpack.c.b16 %v876, %v872
    %v1053 = vpack.c.b16 %v881, %v877
    %v1054 = vpack.c.b16 %v882, %v878
    %v1055 = vpack.c.b16 %v883, %v879
    %v1056 = vpack.c.b16 %v884, %v880
    %v1057 = vpack.c.b16 %v889, %v885
    %v1058 = vpack.c.b16 %v890, %v886
    %v1059 = vpack.c.b16 %v891, %v887
    %v1060 = vpack.c.b16 %v892, %v888
    %v1061 = vpack.c.b16 %v897, %v893
    %v1062 = vpack.c.b16 %v898, %v894
    %v1063 = vpack.c.b16 %v899, %v895
    %v1064 = vpack.c.b16 %v900, %v896
    %v1065 = vpack.c.b16 %v905, %v901
    %v1066 = vpack.c.b16 %v906, %v902
    %v1067 = vpack.c.b16 %v907, %v903
    %v1068 = vpack.c.b16 %v908, %v904
    %v1069 = vpack.c.b16 %v913, %v909
    %v1070 = vpack.c.b16 %v914, %v910
    %v1071 = vpack.c.b16 %v915, %v911
    %v1072 = vpack.c.b16 %v916, %v912
    %v1073 = vpack.c.b16 %v921, %v917
    %v1074 = vpack.c.b16 %v922, %v918
    %v1075 = vpack.c.b16 %v923, %v919
    %v1076 = vpack.c.b16 %v924, %v920
    %v1077 = vpack.c.b16 %v929, %v925
    %v1078 = vpack.c.b16 %v930, %v926
    %v1079 = vpack.c.b16 %v931, %v927
    %v1080 = vpack.c.b16 %v932, %v928
    %v1081 = vpack.c.b16 %v937, %v933
    %v1082 = vpack.c.b16 %v938, %v934
    %v1083 = vpack.c.b16 %v939, %v935
    %v1084 = vpack.c.b16 %v940, %v936
    %v1085 = vpack.c.b16 %v945, %v941
    %v1086 = vpack.c.b16 %v946, %v942
    %v1087 = vpack.c.b16 %v947, %v943
    %v1088 = vpack.c.b16 %v948, %v944
    %v1089 = vpack.c.b16 %v953, %v949
    %v1090 = vpack.c.b16 %v954, %v950
    %v1091 = vpack.c.b16 %v955, %v951
    %v1092 = vpack.c.b16 %v956, %v952
    %v1093 = vpack.c.b16 %v961, %v957
    %v1094 = vpack.c.b16 %v962, %v958
    %v1095 = vpack.c.b16 %v963, %v959
    %v1096 = vpack.c.b16 %v964, %v960
    %v1097 = vpack.c.b16 %v969, %v965
    %v1098 = vpack.c.b16 %v970, %v966
    %v1099 = vpack.c.b16 %v971, %v967
    %v1100 = vpack.c.b16 %v972, %v968
    %1229 = vmatprep.subr.bf16.mxu0 %v1002
    %1230 = vmatpush1.bf16.msra.mxu0 %v1001
    %1231 = vmatprep.subr.bf16.mxu0 %v998
    %1232 = vmatpush1.bf16.msra.mxu0 %v997
    %1233 = vmatprep.subr.bf16.mxu0 %v994
    %1234 = vmatpush1.bf16.msra.mxu0 %v993
    %1235 = vmatprep.subr.bf16.mxu0 %v990
    %1236 = vmatpush1.bf16.msra.mxu0 %v989
    %1237 = vmatprep.subr.bf16.mxu0 %v986
    %1238 = vmatpush1.bf16.msra.mxu0 %v985
    %1239 = vmatprep.subr.bf16.mxu0 %v982
    %1240 = vmatpush1.bf16.msra.mxu0 %v981
    %1241 = vmatprep.subr.bf16.mxu0 %v978
    %1242 = vmatpush1.bf16.msra.mxu0 %v977
    %1243 = vmatprep.subr.bf16.mxu0 %v974
    %1244 = vmatpush1.bf16.msra.mxu0 %v973
    %1245 = vmatprep.subr.bf16.mxu0 %v1034
    %1246 = vmatpush2.bf16.msra.mxu0 %v1033
    %1247 = vmatprep.subr.bf16.mxu0 %v1030
    %1248 = vmatpush2.bf16.msra.mxu0 %v1029
    %1249 = vmatprep.subr.bf16.mxu0 %v1026
    %1250 = vmatpush2.bf16.msra.mxu0 %v1025
    %1251 = vmatprep.subr.bf16.mxu0 %v1022
    %1252 = vmatpush2.bf16.msra.mxu0 %v1021
    %1253 = vmatprep.subr.bf16.mxu0 %v1018
    %1254 = vmatpush2.bf16.msra.mxu0 %v1017
    %1255 = vmatprep.subr.bf16.mxu0 %v1014
    %1256 = vmatpush2.bf16.msra.mxu0 %v1013
    %1257 = vmatprep.subr.bf16.mxu0 %v1010
    %1258 = vmatpush2.bf16.msra.mxu0 %v1009
    %1259 = vmatprep.subr.bf16.mxu0 %v1006
    %1260 = vmatpush2.bf16.msra.mxu0 %v1005
    %1261 = vmatprep.mubr.bf16.mxu0 %v432
    %1262 = vmatmul.mubr.bf16.gmra.mxu0 %v431
    %v1263 = vpop.f32.mrf.mxu0
    %v1264 = vadd.f32 %v572, %v1263
    %v1265 = vpop.f32.mrf.mxu0
    %v1266 = vadd.f32 %v576, %v1265
    %v1267 = vpop.f32.mrf.mxu0
    %v1268 = vpop.f32.mrf.mxu0
    %1269 = vdwg.mxu0
    %1270 = vmatprep.subr.bf16.mxu0 %v1066
    %1271 = vmatpush1.bf16.msra.mxu0 %v1065
    %1272 = vmatprep.subr.bf16.mxu0 %v1062
    %1273 = vmatpush1.bf16.msra.mxu0 %v1061
    %1274 = vmatprep.subr.bf16.mxu0 %v1058
    %1275 = vmatpush1.bf16.msra.mxu0 %v1057
    %1276 = vmatprep.subr.bf16.mxu0 %v1054
    %1277 = vmatpush1.bf16.msra.mxu0 %v1053
    %1278 = vmatprep.subr.bf16.mxu0 %v1050
    %1279 = vmatpush1.bf16.msra.mxu0 %v1049
    %1280 = vmatprep.subr.bf16.mxu0 %v1046
    %1281 = vmatpush1.bf16.msra.mxu0 %v1045
    %1282 = vmatprep.subr.bf16.mxu0 %v1042
    %1283 = vmatpush1.bf16.msra.mxu0 %v1041
    %1284 = vmatprep.subr.bf16.mxu0 %v1038
    %1285 = vmatpush1.bf16.msra.mxu0 %v1037
    %1286 = vmatprep.subr.bf16.mxu0 %v1098
    %1287 = vmatpush2.bf16.msra.mxu0 %v1097
    %1288 = vmatprep.subr.bf16.mxu0 %v1094
    %1289 = vmatpush2.bf16.msra.mxu0 %v1093
    %1290 = vmatprep.subr.bf16.mxu0 %v1090
    %1291 = vmatpush2.bf16.msra.mxu0 %v1089
    %1292 = vmatprep.subr.bf16.mxu0 %v1086
    %1293 = vmatpush2.bf16.msra.mxu0 %v1085
    %1294 = vmatprep.subr.bf16.mxu0 %v1082
    %1295 = vmatpush2.bf16.msra.mxu0 %v1081
    %1296 = vmatprep.subr.bf16.mxu0 %v1078
    %1297 = vmatpush2.bf16.msra.mxu0 %v1077
    %1298 = vmatprep.subr.bf16.mxu0 %v1074
    %1299 = vmatpush2.bf16.msra.mxu0 %v1073
    %1300 = vmatprep.subr.bf16.mxu0 %v1070
    %1301 = vmatpush2.bf16.msra.mxu0 %v1069
    %1302 = vmatprep.mubr.bf16.mxu0 %v434
    %1303 = vmatmul.mubr.bf16.gmra.mxu0 %v433
    %v1304 = vpop.f32.mrf.mxu0
    %v1305 = vadd.f32 %v1264, %v1304
    %v1306 = vpop.f32.mrf.mxu0
    %v1307 = vadd.f32 %v1266, %v1306
    %v1308 = vpop.f32.mrf.mxu0
    %v1309 = vpop.f32.mrf.mxu0
    %1310 = vdwg.mxu0
    %1311 = vmatprep.subr.bf16.mxu0 %v1004
    %1312 = vmatpush1.bf16.msra.mxu0 %v1003
    %1313 = vmatprep.subr.bf16.mxu0 %v1000
    %1314 = vmatpush1.bf16.msra.mxu0 %v999
    %1315 = vmatprep.subr.bf16.mxu0 %v996
    %1316 = vmatpush1.bf16.msra.mxu0 %v995
    %1317 = vmatprep.subr.bf16.mxu0 %v992
    %1318 = vmatpush1.bf16.msra.mxu0 %v991
    %1319 = vmatprep.subr.bf16.mxu0 %v988
    %1320 = vmatpush1.bf16.msra.mxu0 %v987
    %1321 = vmatprep.subr.bf16.mxu0 %v984
    %1322 = vmatpush1.bf16.msra.mxu0 %v983
    %1323 = vmatprep.subr.bf16.mxu0 %v980
    %1324 = vmatpush1.bf16.msra.mxu0 %v979
    %1325 = vmatprep.subr.bf16.mxu0 %v976
    %1326 = vmatpush1.bf16.msra.mxu0 %v975
    %1327 = vmatprep.subr.bf16.mxu0 %v1036
    %1328 = vmatpush2.bf16.msra.mxu0 %v1035
    %1329 = vmatprep.subr.bf16.mxu0 %v1032
    %1330 = vmatpush2.bf16.msra.mxu0 %v1031
    %1331 = vmatprep.subr.bf16.mxu0 %v1028
    %1332 = vmatpush2.bf16.msra.mxu0 %v1027
    %1333 = vmatprep.subr.bf16.mxu0 %v1024
    %1334 = vmatpush2.bf16.msra.mxu0 %v1023
    %1335 = vmatprep.subr.bf16.mxu0 %v1020
    %1336 = vmatpush2.bf16.msra.mxu0 %v1019
    %1337 = vmatprep.subr.bf16.mxu0 %v1016
    %1338 = vmatpush2.bf16.msra.mxu0 %v1015
    %1339 = vmatprep.subr.bf16.mxu0 %v1012
    %1340 = vmatpush2.bf16.msra.mxu0 %v1011
    %1341 = vmatprep.subr.bf16.mxu0 %v1008
    %1342 = vmatpush2.bf16.msra.mxu0 %v1007
    %1343 = vmatprep.mubr.bf16.mxu0 %v432
    %1344 = vmatmul.mubr.bf16.gmra.mxu0 %v431
    %v1345 = vpop.f32.mrf.mxu0
    %v1346 = vadd.f32 %v580, %v1345
    %v1347 = vpop.f32.mrf.mxu0
    %v1348 = vadd.f32 %v584, %v1347
    %v1349 = vpop.f32.mrf.mxu0
    %v1350 = vpop.f32.mrf.mxu0
    %1351 = vdwg.mxu0
    %1352 = vmatprep.subr.bf16.mxu0 %v1068
    %1353 = vmatpush1.bf16.msra.mxu0 %v1067
    %1354 = vmatprep.subr.bf16.mxu0 %v1064
    %1355 = vmatpush1.bf16.msra.mxu0 %v1063
    %1356 = vmatprep.subr.bf16.mxu0 %v1060
    %1357 = vmatpush1.bf16.msra.mxu0 %v1059
    %1358 = vmatprep.subr.bf16.mxu0 %v1056
    %1359 = vmatpush1.bf16.msra.mxu0 %v1055
    %1360 = vmatprep.subr.bf16.mxu0 %v1052
    %1361 = vmatpush1.bf16.msra.mxu0 %v1051
    %1362 = vmatprep.subr.bf16.mxu0 %v1048
    %1363 = vmatpush1.bf16.msra.mxu0 %v1047
    %1364 = vmatprep.subr.bf16.mxu0 %v1044
    %1365 = vmatpush1.bf16.msra.mxu0 %v1043
    %1366 = vmatprep.subr.bf16.mxu0 %v1040
    %1367 = vmatpush1.bf16.msra.mxu0 %v1039
    %1368 = vmatprep.subr.bf16.mxu0 %v1100
    %1369 = vmatpush2.bf16.msra.mxu0 %v1099
    %1370 = vmatprep.subr.bf16.mxu0 %v1096
    %1371 = vmatpush2.bf16.msra.mxu0 %v1095
    %1372 = vmatprep.subr.bf16.mxu0 %v1092
    %1373 = vmatpush2.bf16.msra.mxu0 %v1091
    %1374 = vmatprep.subr.bf16.mxu0 %v1088
    %1375 = vmatpush2.bf16.msra.mxu0 %v1087
    %1376 = vmatprep.subr.bf16.mxu0 %v1084
    %1377 = vmatpush2.bf16.msra.mxu0 %v1083
    %1378 = vmatprep.subr.bf16.mxu0 %v1080
    %1379 = vmatpush2.bf16.msra.mxu0 %v1079
    %1380 = vmatprep.subr.bf16.mxu0 %v1076
    %1381 = vmatpush2.bf16.msra.mxu0 %v1075
    %1382 = vmatprep.subr.bf16.mxu0 %v1072
    %1383 = vmatpush2.bf16.msra.mxu0 %v1071
    %1384 = vmatprep.mubr.bf16.mxu0 %v434
    %1385 = vmatmul.mubr.bf16.gmra.mxu0 %v433
    %v1386 = vpop.f32.mrf.mxu0
    %v1387 = vadd.f32 %v1346, %v1386
    %v1388 = vpop.f32.mrf.mxu0
    %v1389 = vadd.f32 %v1348, %v1388
    %v1390 = vpop.f32.mrf.mxu0
    %v1391 = vpop.f32.mrf.mxu0
    %1392 = vdwg.mxu0
    %v1393 = vmax.f32 %v1305, 0.0
    %v1394 = vmax.f32 %v1307, 0.0
    %v1395 = vmax.f32 %v1387, 0.0
    %v1396 = vmax.f32 %v1389, 0.0
    %v1397 = vpack.c.bf16 %v1393, %v1393
    %v1398 = vpack.c.bf16 %v1394, %v1394
    %v1399 = vpack.c.bf16 %v1395, %v1395
    %v1400 = vpack.c.bf16 %v1396, %v1396
    %v1401 = vld [vmem:[#allocation10] sm:$0xff]
    %v1402 = vld [vmem:[#allocation10 + $0x8] sm:$0xff]
    %v1403 = vld [vmem:[#allocation10 + $0x10] sm:$0xff]
    %v1404 = vld [vmem:[#allocation10 + $0x18] sm:$0xff]
    %v1405 = vld [vmem:[#allocation10 + $0x20] sm:$0xff]
    %v1406 = vld [vmem:[#allocation10 + $0x28] sm:$0xff]
    %v1407 = vld [vmem:[#allocation10 + $0x30] sm:$0xff]
    %v1408 = vld [vmem:[#allocation10 + $0x38] sm:$0xff]
    %v1409 = vld [vmem:[#allocation10 + $0x40] sm:$0xff]
    %v1410 = vld [vmem:[#allocation10 + $0x48] sm:$0xff]
    %v1411 = vld [vmem:[#allocation10 + $0x50] sm:$0xff]
    %v1412 = vld [vmem:[#allocation10 + $0x58] sm:$0xff]
    %v1413 = vld [vmem:[#allocation10 + $0x60] sm:$0xff]
    %v1414 = vld [vmem:[#allocation10 + $0x68] sm:$0xff]
    %v1415 = vld [vmem:[#allocation10 + $0x70] sm:$0xff]
    %v1416 = vld [vmem:[#allocation10 + $0x78] sm:$0xff]
    %v1417 = vld [vmem:[#allocation10 + $0x80] sm:$0xff]
    %v1418 = vld [vmem:[#allocation10 + $0x88] sm:$0xff]
    %v1419 = vld [vmem:[#allocation10 + $0x90] sm:$0xff]
    %v1420 = vld [vmem:[#allocation10 + $0x98] sm:$0xff]
    %v1421 = vld [vmem:[#allocation10 + $0xa0] sm:$0xff]
    %v1422 = vld [vmem:[#allocation10 + $0xa8] sm:$0xff]
    %v1423 = vld [vmem:[#allocation10 + $0xb0] sm:$0xff]
    %v1424 = vld [vmem:[#allocation10 + $0xb8] sm:$0xff]
    %v1425 = vld [vmem:[#allocation10 + $0xc0] sm:$0xff]
    %v1426 = vld [vmem:[#allocation10 + $0xc8] sm:$0xff]
    %v1427 = vld [vmem:[#allocation10 + $0xd0] sm:$0xff]
    %v1428 = vld [vmem:[#allocation10 + $0xd8] sm:$0xff]
    %v1429 = vld [vmem:[#allocation10 + $0xe0] sm:$0xff]
    %v1430 = vld [vmem:[#allocation10 + $0xe8] sm:$0xff]
    %v1431 = vld [vmem:[#allocation10 + $0xf0] sm:$0xff]
    %v1432 = vld [vmem:[#allocation10 + $0xf8] sm:$0xff]
    %v1433 = vld [vmem:[#allocation10 + $0x100] sm:$0xff]
    %v1434 = vld [vmem:[#allocation10 + $0x108] sm:$0xff]
    %v1435 = vld [vmem:[#allocation10 + $0x110] sm:$0xff]
    %v1436 = vld [vmem:[#allocation10 + $0x118] sm:$0xff]
    %v1437 = vld [vmem:[#allocation10 + $0x120] sm:$0xff]
    %v1438 = vld [vmem:[#allocation10 + $0x128] sm:$0xff]
    %v1439 = vld [vmem:[#allocation10 + $0x130] sm:$0xff]
    %v1440 = vld [vmem:[#allocation10 + $0x138] sm:$0xff]
    %v1441 = vld [vmem:[#allocation10 + $0x140] sm:$0xff]
    %v1442 = vld [vmem:[#allocation10 + $0x148] sm:$0xff]
    %v1443 = vld [vmem:[#allocation10 + $0x150] sm:$0xff]
    %v1444 = vld [vmem:[#allocation10 + $0x158] sm:$0xff]
    %v1445 = vld [vmem:[#allocation10 + $0x160] sm:$0xff]
    %v1446 = vld [vmem:[#allocation10 + $0x168] sm:$0xff]
    %v1447 = vld [vmem:[#allocation10 + $0x170] sm:$0xff]
    %v1448 = vld [vmem:[#allocation10 + $0x178] sm:$0xff]
    %v1449 = vld [vmem:[#allocation10 + $0x180] sm:$0xff]
    %v1450 = vld [vmem:[#allocation10 + $0x188] sm:$0xff]
    %v1451 = vld [vmem:[#allocation10 + $0x190] sm:$0xff]
    %v1452 = vld [vmem:[#allocation10 + $0x198] sm:$0xff]
    %v1453 = vld [vmem:[#allocation10 + $0x1a0] sm:$0xff]
    %v1454 = vld [vmem:[#allocation10 + $0x1a8] sm:$0xff]
    %v1455 = vld [vmem:[#allocation10 + $0x1b0] sm:$0xff]
    %v1456 = vld [vmem:[#allocation10 + $0x1b8] sm:$0xff]
    %v1457 = vld [vmem:[#allocation10 + $0x1c0] sm:$0xff]
    %v1458 = vld [vmem:[#allocation10 + $0x1c8] sm:$0xff]
    %v1459 = vld [vmem:[#allocation10 + $0x1d0] sm:$0xff]
    %v1460 = vld [vmem:[#allocation10 + $0x1d8] sm:$0xff]
    %v1461 = vld [vmem:[#allocation10 + $0x1e0] sm:$0xff]
    %v1462 = vld [vmem:[#allocation10 + $0x1e8] sm:$0xff]
    %v1463 = vld [vmem:[#allocation10 + $0x1f0] sm:$0xff]
    %v1464 = vld [vmem:[#allocation10 + $0x1f8] sm:$0xff]
    %v1465 = vld [vmem:[#allocation10 + $0x200] sm:$0xff]
    %v1466 = vld [vmem:[#allocation10 + $0x208] sm:$0xff]
    %v1467 = vld [vmem:[#allocation10 + $0x210] sm:$0xff]
    %v1468 = vld [vmem:[#allocation10 + $0x218] sm:$0xff]
    %v1469 = vld [vmem:[#allocation10 + $0x220] sm:$0xff]
    %v1470 = vld [vmem:[#allocation10 + $0x228] sm:$0xff]
    %v1471 = vld [vmem:[#allocation10 + $0x230] sm:$0xff]
    %v1472 = vld [vmem:[#allocation10 + $0x238] sm:$0xff]
    %v1473 = vld [vmem:[#allocation10 + $0x240] sm:$0xff]
    %v1474 = vld [vmem:[#allocation10 + $0x248] sm:$0xff]
    %v1475 = vld [vmem:[#allocation10 + $0x250] sm:$0xff]
    %v1476 = vld [vmem:[#allocation10 + $0x258] sm:$0xff]
    %v1477 = vld [vmem:[#allocation10 + $0x260] sm:$0xff]
    %v1478 = vld [vmem:[#allocation10 + $0x268] sm:$0xff]
    %v1479 = vld [vmem:[#allocation10 + $0x270] sm:$0xff]
    %v1480 = vld [vmem:[#allocation10 + $0x278] sm:$0xff]
    %v1481 = vld [vmem:[#allocation10 + $0x280] sm:$0xff]
    %v1482 = vld [vmem:[#allocation10 + $0x288] sm:$0xff]
    %v1483 = vld [vmem:[#allocation10 + $0x290] sm:$0xff]
    %v1484 = vld [vmem:[#allocation10 + $0x298] sm:$0xff]
    %v1485 = vld [vmem:[#allocation10 + $0x2a0] sm:$0xff]
    %v1486 = vld [vmem:[#allocation10 + $0x2a8] sm:$0xff]
    %v1487 = vld [vmem:[#allocation10 + $0x2b0] sm:$0xff]
    %v1488 = vld [vmem:[#allocation10 + $0x2b8] sm:$0xff]
    %v1489 = vld [vmem:[#allocation10 + $0x2c0] sm:$0xff]
    %v1490 = vld [vmem:[#allocation10 + $0x2c8] sm:$0xff]
    %v1491 = vld [vmem:[#allocation10 + $0x2d0] sm:$0xff]
    %v1492 = vld [vmem:[#allocation10 + $0x2d8] sm:$0xff]
    %v1493 = vld [vmem:[#allocation10 + $0x2e0] sm:$0xff]
    %v1494 = vld [vmem:[#allocation10 + $0x2e8] sm:$0xff]
    %v1495 = vld [vmem:[#allocation10 + $0x2f0] sm:$0xff]
    %v1496 = vld [vmem:[#allocation10 + $0x2f8] sm:$0xff]
    %v1497 = vld [vmem:[#allocation10 + $0x300] sm:$0xff]
    %v1498 = vld [vmem:[#allocation10 + $0x308] sm:$0xff]
    %v1499 = vld [vmem:[#allocation10 + $0x310] sm:$0xff]
    %v1500 = vld [vmem:[#allocation10 + $0x318] sm:$0xff]
    %v1501 = vld [vmem:[#allocation10 + $0x320] sm:$0xff]
    %v1502 = vld [vmem:[#allocation10 + $0x328] sm:$0xff]
    %v1503 = vld [vmem:[#allocation10 + $0x330] sm:$0xff]
    %v1504 = vld [vmem:[#allocation10 + $0x338] sm:$0xff]
    %v1505 = vld [vmem:[#allocation10 + $0x340] sm:$0xff]
    %v1506 = vld [vmem:[#allocation10 + $0x348] sm:$0xff]
    %v1507 = vld [vmem:[#allocation10 + $0x350] sm:$0xff]
    %v1508 = vld [vmem:[#allocation10 + $0x358] sm:$0xff]
    %v1509 = vld [vmem:[#allocation10 + $0x360] sm:$0xff]
    %v1510 = vld [vmem:[#allocation10 + $0x368] sm:$0xff]
    %v1511 = vld [vmem:[#allocation10 + $0x370] sm:$0xff]
    %v1512 = vld [vmem:[#allocation10 + $0x378] sm:$0xff]
    %v1513 = vld [vmem:[#allocation10 + $0x380] sm:$0xff]
    %v1514 = vld [vmem:[#allocation10 + $0x388] sm:$0xff]
    %v1515 = vld [vmem:[#allocation10 + $0x390] sm:$0xff]
    %v1516 = vld [vmem:[#allocation10 + $0x398] sm:$0xff]
    %v1517 = vld [vmem:[#allocation10 + $0x3a0] sm:$0xff]
    %v1518 = vld [vmem:[#allocation10 + $0x3a8] sm:$0xff]
    %v1519 = vld [vmem:[#allocation10 + $0x3b0] sm:$0xff]
    %v1520 = vld [vmem:[#allocation10 + $0x3b8] sm:$0xff]
    %v1521 = vld [vmem:[#allocation10 + $0x3c0] sm:$0xff]
    %v1522 = vld [vmem:[#allocation10 + $0x3c8] sm:$0xff]
    %v1523 = vld [vmem:[#allocation10 + $0x3d0] sm:$0xff]
    %v1524 = vld [vmem:[#allocation10 + $0x3d8] sm:$0xff]
    %v1525 = vld [vmem:[#allocation10 + $0x3e0] sm:$0xff]
    %v1526 = vld [vmem:[#allocation10 + $0x3e8] sm:$0xff]
    %v1527 = vld [vmem:[#allocation10 + $0x3f0] sm:$0xff]
    %v1528 = vld [vmem:[#allocation10 + $0x3f8] sm:$0xff]
    %v1529 = vld [vmem:[%s6] sm:$0xf]
    %v1531 = vlaneseq
    %v1532 = vshrl.u32 %v1531, 7
    %v1533 = vsub.s32 0, %v1532
    %v1534 = vrot.slane %v1529, %v1533
    %v1535 = vlaneseq
    %v1536 = vshrl.u32 %v1535, 7
    %v1537 = vsub.s32 1, %v1536
    %v1538 = vrot.slane %v1529, %v1537
    %v1539 = vlaneseq
    %v1540 = vshrl.u32 %v1539, 7
    %v1541 = vsub.s32 2, %v1540
    %v1542 = vrot.slane %v1529, %v1541
    %v1543 = vlaneseq
    %v1544 = vshrl.u32 %v1543, 7
    %v1545 = vsub.s32 3, %v1544
    %v1546 = vrot.slane %v1529, %v1545
    %v1679 = vunpack.c.l.b16 %v1401
    %v1680 = vunpack.c.h.b16 %v1401
    %v1681 = vunpack.c.l.b16 %v1402
    %v1682 = vunpack.c.h.b16 %v1402
    %v1683 = vunpack.c.l.b16 %v1403
    %v1684 = vunpack.c.h.b16 %v1403
    %v1685 = vunpack.c.l.b16 %v1404
    %v1686 = vunpack.c.h.b16 %v1404
    %v1687 = vunpack.c.l.b16 %v1405
    %v1688 = vunpack.c.h.b16 %v1405
    %v1689 = vunpack.c.l.b16 %v1406
    %v1690 = vunpack.c.h.b16 %v1406
    %v1691 = vunpack.c.l.b16 %v1407
    %v1692 = vunpack.c.h.b16 %v1407
    %v1693 = vunpack.c.l.b16 %v1408
    %v1694 = vunpack.c.h.b16 %v1408
    %v1695 = vunpack.c.l.b16 %v1409
    %v1696 = vunpack.c.h.b16 %v1409
    %v1697 = vunpack.c.l.b16 %v1410
    %v1698 = vunpack.c.h.b16 %v1410
    %v1699 = vunpack.c.l.b16 %v1411
    %v1700 = vunpack.c.h.b16 %v1411
    %v1701 = vunpack.c.l.b16 %v1412
    %v1702 = vunpack.c.h.b16 %v1412
    %v1703 = vunpack.c.l.b16 %v1413
    %v1704 = vunpack.c.h.b16 %v1413
    %v1705 = vunpack.c.l.b16 %v1414
    %v1706 = vunpack.c.h.b16 %v1414
    %v1707 = vunpack.c.l.b16 %v1415
    %v1708 = vunpack.c.h.b16 %v1415
    %v1709 = vunpack.c.l.b16 %v1416
    %v1710 = vunpack.c.h.b16 %v1416
    %v1711 = vunpack.c.l.b16 %v1417
    %v1712 = vunpack.c.h.b16 %v1417
    %v1713 = vunpack.c.l.b16 %v1418
    %v1714 = vunpack.c.h.b16 %v1418
    %v1715 = vunpack.c.l.b16 %v1419
    %v1716 = vunpack.c.h.b16 %v1419
    %v1717 = vunpack.c.l.b16 %v1420
    %v1718 = vunpack.c.h.b16 %v1420
    %v1719 = vunpack.c.l.b16 %v1421
    %v1720 = vunpack.c.h.b16 %v1421
    %v1721 = vunpack.c.l.b16 %v1422
    %v1722 = vunpack.c.h.b16 %v1422
    %v1723 = vunpack.c.l.b16 %v1423
    %v1724 = vunpack.c.h.b16 %v1423
    %v1725 = vunpack.c.l.b16 %v1424
    %v1726 = vunpack.c.h.b16 %v1424
    %v1727 = vunpack.c.l.b16 %v1425
    %v1728 = vunpack.c.h.b16 %v1425
    %v1729 = vunpack.c.l.b16 %v1426
    %v1730 = vunpack.c.h.b16 %v1426
    %v1731 = vunpack.c.l.b16 %v1427
    %v1732 = vunpack.c.h.b16 %v1427
    %v1733 = vunpack.c.l.b16 %v1428
    %v1734 = vunpack.c.h.b16 %v1428
    %v1735 = vunpack.c.l.b16 %v1429
    %v1736 = vunpack.c.h.b16 %v1429
    %v1737 = vunpack.c.l.b16 %v1430
    %v1738 = vunpack.c.h.b16 %v1430
    %v1739 = vunpack.c.l.b16 %v1431
    %v1740 = vunpack.c.h.b16 %v1431
    %v1741 = vunpack.c.l.b16 %v1432
    %v1742 = vunpack.c.h.b16 %v1432
    %v1743 = vunpack.c.l.b16 %v1433
    %v1744 = vunpack.c.h.b16 %v1433
    %v1745 = vunpack.c.l.b16 %v1434
    %v1746 = vunpack.c.h.b16 %v1434
    %v1747 = vunpack.c.l.b16 %v1435
    %v1748 = vunpack.c.h.b16 %v1435
    %v1749 = vunpack.c.l.b16 %v1436
    %v1750 = vunpack.c.h.b16 %v1436
    %v1751 = vunpack.c.l.b16 %v1437
    %v1752 = vunpack.c.h.b16 %v1437
    %v1753 = vunpack.c.l.b16 %v1438
    %v1754 = vunpack.c.h.b16 %v1438
    %v1755 = vunpack.c.l.b16 %v1439
    %v1756 = vunpack.c.h.b16 %v1439
    %v1757 = vunpack.c.l.b16 %v1440
    %v1758 = vunpack.c.h.b16 %v1440
    %v1759 = vunpack.c.l.b16 %v1441
    %v1760 = vunpack.c.h.b16 %v1441
    %v1761 = vunpack.c.l.b16 %v1442
    %v1762 = vunpack.c.h.b16 %v1442
    %v1763 = vunpack.c.l.b16 %v1443
    %v1764 = vunpack.c.h.b16 %v1443
    %v1765 = vunpack.c.l.b16 %v1444
    %v1766 = vunpack.c.h.b16 %v1444
    %v1767 = vunpack.c.l.b16 %v1445
    %v1768 = vunpack.c.h.b16 %v1445
    %v1769 = vunpack.c.l.b16 %v1446
    %v1770 = vunpack.c.h.b16 %v1446
    %v1771 = vunpack.c.l.b16 %v1447
    %v1772 = vunpack.c.h.b16 %v1447
    %v1773 = vunpack.c.l.b16 %v1448
    %v1774 = vunpack.c.h.b16 %v1448
    %v1775 = vunpack.c.l.b16 %v1449
    %v1776 = vunpack.c.h.b16 %v1449
    %v1777 = vunpack.c.l.b16 %v1450
    %v1778 = vunpack.c.h.b16 %v1450
    %v1779 = vunpack.c.l.b16 %v1451
    %v1780 = vunpack.c.h.b16 %v1451
    %v1781 = vunpack.c.l.b16 %v1452
    %v1782 = vunpack.c.h.b16 %v1452
    %v1783 = vunpack.c.l.b16 %v1453
    %v1784 = vunpack.c.h.b16 %v1453
    %v1785 = vunpack.c.l.b16 %v1454
    %v1786 = vunpack.c.h.b16 %v1454
    %v1787 = vunpack.c.l.b16 %v1455
    %v1788 = vunpack.c.h.b16 %v1455
    %v1789 = vunpack.c.l.b16 %v1456
    %v1790 = vunpack.c.h.b16 %v1456
    %v1791 = vunpack.c.l.b16 %v1457
    %v1792 = vunpack.c.h.b16 %v1457
    %v1793 = vunpack.c.l.b16 %v1458
    %v1794 = vunpack.c.h.b16 %v1458
    %v1795 = vunpack.c.l.b16 %v1459
    %v1796 = vunpack.c.h.b16 %v1459
    %v1797 = vunpack.c.l.b16 %v1460
    %v1798 = vunpack.c.h.b16 %v1460
    %v1799 = vunpack.c.l.b16 %v1461
    %v1800 = vunpack.c.h.b16 %v1461
    %v1801 = vunpack.c.l.b16 %v1462
    %v1802 = vunpack.c.h.b16 %v1462
    %v1803 = vunpack.c.l.b16 %v1463
    %v1804 = vunpack.c.h.b16 %v1463
    %v1805 = vunpack.c.l.b16 %v1464
    %v1806 = vunpack.c.h.b16 %v1464
    %v1807 = vunpack.c.l.b16 %v1465
    %v1808 = vunpack.c.h.b16 %v1465
    %v1809 = vunpack.c.l.b16 %v1466
    %v1810 = vunpack.c.h.b16 %v1466
    %v1811 = vunpack.c.l.b16 %v1467
    %v1812 = vunpack.c.h.b16 %v1467
    %v1813 = vunpack.c.l.b16 %v1468
    %v1814 = vunpack.c.h.b16 %v1468
    %v1815 = vunpack.c.l.b16 %v1469
    %v1816 = vunpack.c.h.b16 %v1469
    %v1817 = vunpack.c.l.b16 %v1470
    %v1818 = vunpack.c.h.b16 %v1470
    %v1819 = vunpack.c.l.b16 %v1471
    %v1820 = vunpack.c.h.b16 %v1471
    %v1821 = vunpack.c.l.b16 %v1472
    %v1822 = vunpack.c.h.b16 %v1472
    %v1823 = vunpack.c.l.b16 %v1473
    %v1824 = vunpack.c.h.b16 %v1473
    %v1825 = vunpack.c.l.b16 %v1474
    %v1826 = vunpack.c.h.b16 %v1474
    %v1827 = vunpack.c.l.b16 %v1475
    %v1828 = vunpack.c.h.b16 %v1475
    %v1829 = vunpack.c.l.b16 %v1476
    %v1830 = vunpack.c.h.b16 %v1476
    %v1831 = vunpack.c.l.b16 %v1477
    %v1832 = vunpack.c.h.b16 %v1477
    %v1833 = vunpack.c.l.b16 %v1478
    %v1834 = vunpack.c.h.b16 %v1478
    %v1835 = vunpack.c.l.b16 %v1479
    %v1836 = vunpack.c.h.b16 %v1479
    %v1837 = vunpack.c.l.b16 %v1480
    %v1838 = vunpack.c.h.b16 %v1480
    %v1839 = vunpack.c.l.b16 %v1481
    %v1840 = vunpack.c.h.b16 %v1481
    %v1841 = vunpack.c.l.b16 %v1482
    %v1842 = vunpack.c.h.b16 %v1482
    %v1843 = vunpack.c.l.b16 %v1483
    %v1844 = vunpack.c.h.b16 %v1483
    %v1845 = vunpack.c.l.b16 %v1484
    %v1846 = vunpack.c.h.b16 %v1484
    %v1847 = vunpack.c.l.b16 %v1485
    %v1848 = vunpack.c.h.b16 %v1485
    %v1849 = vunpack.c.l.b16 %v1486
    %v1850 = vunpack.c.h.b16 %v1486
    %v1851 = vunpack.c.l.b16 %v1487
    %v1852 = vunpack.c.h.b16 %v1487
    %v1853 = vunpack.c.l.b16 %v1488
    %v1854 = vunpack.c.h.b16 %v1488
    %v1855 = vunpack.c.l.b16 %v1489
    %v1856 = vunpack.c.h.b16 %v1489
    %v1857 = vunpack.c.l.b16 %v1490
    %v1858 = vunpack.c.h.b16 %v1490
    %v1859 = vunpack.c.l.b16 %v1491
    %v1860 = vunpack.c.h.b16 %v1491
    %v1861 = vunpack.c.l.b16 %v1492
    %v1862 = vunpack.c.h.b16 %v1492
    %v1863 = vunpack.c.l.b16 %v1493
    %v1864 = vunpack.c.h.b16 %v1493
    %v1865 = vunpack.c.l.b16 %v1494
    %v1866 = vunpack.c.h.b16 %v1494
    %v1867 = vunpack.c.l.b16 %v1495
    %v1868 = vunpack.c.h.b16 %v1495
    %v1869 = vunpack.c.l.b16 %v1496
    %v1870 = vunpack.c.h.b16 %v1496
    %v1871 = vunpack.c.l.b16 %v1497
    %v1872 = vunpack.c.h.b16 %v1497
    %v1873 = vunpack.c.l.b16 %v1498
    %v1874 = vunpack.c.h.b16 %v1498
    %v1875 = vunpack.c.l.b16 %v1499
    %v1876 = vunpack.c.h.b16 %v1499
    %v1877 = vunpack.c.l.b16 %v1500
    %v1878 = vunpack.c.h.b16 %v1500
    %v1879 = vunpack.c.l.b16 %v1501
    %v1880 = vunpack.c.h.b16 %v1501
    %v1881 = vunpack.c.l.b16 %v1502
    %v1882 = vunpack.c.h.b16 %v1502
    %v1883 = vunpack.c.l.b16 %v1503
    %v1884 = vunpack.c.h.b16 %v1503
    %v1885 = vunpack.c.l.b16 %v1504
    %v1886 = vunpack.c.h.b16 %v1504
    %v1887 = vunpack.c.l.b16 %v1505
    %v1888 = vunpack.c.h.b16 %v1505
    %v1889 = vunpack.c.l.b16 %v1506
    %v1890 = vunpack.c.h.b16 %v1506
    %v1891 = vunpack.c.l.b16 %v1507
    %v1892 = vunpack.c.h.b16 %v1507
    %v1893 = vunpack.c.l.b16 %v1508
    %v1894 = vunpack.c.h.b16 %v1508
    %v1895 = vunpack.c.l.b16 %v1509
    %v1896 = vunpack.c.h.b16 %v1509
    %v1897 = vunpack.c.l.b16 %v1510
    %v1898 = vunpack.c.h.b16 %v1510
    %v1899 = vunpack.c.l.b16 %v1511
    %v1900 = vunpack.c.h.b16 %v1511
    %v1901 = vunpack.c.l.b16 %v1512
    %v1902 = vunpack.c.h.b16 %v1512
    %v1903 = vunpack.c.l.b16 %v1513
    %v1904 = vunpack.c.h.b16 %v1513
    %v1905 = vunpack.c.l.b16 %v1514
    %v1906 = vunpack.c.h.b16 %v1514
    %v1907 = vunpack.c.l.b16 %v1515
    %v1908 = vunpack.c.h.b16 %v1515
    %v1909 = vunpack.c.l.b16 %v1516
    %v1910 = vunpack.c.h.b16 %v1516
    %v1911 = vunpack.c.l.b16 %v1517
    %v1912 = vunpack.c.h.b16 %v1517
    %v1913 = vunpack.c.l.b16 %v1518
    %v1914 = vunpack.c.h.b16 %v1518
    %v1915 = vunpack.c.l.b16 %v1519
    %v1916 = vunpack.c.h.b16 %v1519
    %v1917 = vunpack.c.l.b16 %v1520
    %v1918 = vunpack.c.h.b16 %v1520
    %v1919 = vunpack.c.l.b16 %v1521
    %v1920 = vunpack.c.h.b16 %v1521
    %v1921 = vunpack.c.l.b16 %v1522
    %v1922 = vunpack.c.h.b16 %v1522
    %v1923 = vunpack.c.l.b16 %v1523
    %v1924 = vunpack.c.h.b16 %v1523
    %v1925 = vunpack.c.l.b16 %v1524
    %v1926 = vunpack.c.h.b16 %v1524
    %v1927 = vunpack.c.l.b16 %v1525
    %v1928 = vunpack.c.h.b16 %v1525
    %v1929 = vunpack.c.l.b16 %v1526
    %v1930 = vunpack.c.h.b16 %v1526
    %v1931 = vunpack.c.l.b16 %v1527
    %v1932 = vunpack.c.h.b16 %v1527
    %v1933 = vunpack.c.l.b16 %v1528
    %v1934 = vunpack.c.h.b16 %v1528
    %v1935 = vpack.c.b16 %v1683, %v1679
    %v1936 = vpack.c.b16 %v1684, %v1680
    %v1937 = vpack.c.b16 %v1685, %v1681
    %v1938 = vpack.c.b16 %v1686, %v1682
    %v1939 = vpack.c.b16 %v1691, %v1687
    %v1940 = vpack.c.b16 %v1692, %v1688
    %v1941 = vpack.c.b16 %v1693, %v1689
    %v1942 = vpack.c.b16 %v1694, %v1690
    %v1943 = vpack.c.b16 %v1699, %v1695
    %v1944 = vpack.c.b16 %v1700, %v1696
    %v1945 = vpack.c.b16 %v1701, %v1697
    %v1946 = vpack.c.b16 %v1702, %v1698
    %v1947 = vpack.c.b16 %v1707, %v1703
    %v1948 = vpack.c.b16 %v1708, %v1704
    %v1949 = vpack.c.b16 %v1709, %v1705
    %v1950 = vpack.c.b16 %v1710, %v1706
    %v1951 = vpack.c.b16 %v1715, %v1711
    %v1952 = vpack.c.b16 %v1716, %v1712
    %v1953 = vpack.c.b16 %v1717, %v1713
    %v1954 = vpack.c.b16 %v1718, %v1714
    %v1955 = vpack.c.b16 %v1723, %v1719
    %v1956 = vpack.c.b16 %v1724, %v1720
    %v1957 = vpack.c.b16 %v1725, %v1721
    %v1958 = vpack.c.b16 %v1726, %v1722
    %v1959 = vpack.c.b16 %v1731, %v1727
    %v1960 = vpack.c.b16 %v1732, %v1728
    %v1961 = vpack.c.b16 %v1733, %v1729
    %v1962 = vpack.c.b16 %v1734, %v1730
    %v1963 = vpack.c.b16 %v1739, %v1735
    %v1964 = vpack.c.b16 %v1740, %v1736
    %v1965 = vpack.c.b16 %v1741, %v1737
    %v1966 = vpack.c.b16 %v1742, %v1738
    %v1967 = vpack.c.b16 %v1747, %v1743
    %v1968 = vpack.c.b16 %v1748, %v1744
    %v1969 = vpack.c.b16 %v1749, %v1745
    %v1970 = vpack.c.b16 %v1750, %v1746
    %v1971 = vpack.c.b16 %v1755, %v1751
    %v1972 = vpack.c.b16 %v1756, %v1752
    %v1973 = vpack.c.b16 %v1757, %v1753
    %v1974 = vpack.c.b16 %v1758, %v1754
    %v1975 = vpack.c.b16 %v1763, %v1759
    %v1976 = vpack.c.b16 %v1764, %v1760
    %v1977 = vpack.c.b16 %v1765, %v1761
    %v1978 = vpack.c.b16 %v1766, %v1762
    %v1979 = vpack.c.b16 %v1771, %v1767
    %v1980 = vpack.c.b16 %v1772, %v1768
    %v1981 = vpack.c.b16 %v1773, %v1769
    %v1982 = vpack.c.b16 %v1774, %v1770
    %v1983 = vpack.c.b16 %v1779, %v1775
    %v1984 = vpack.c.b16 %v1780, %v1776
    %v1985 = vpack.c.b16 %v1781, %v1777
    %v1986 = vpack.c.b16 %v1782, %v1778
    %v1987 = vpack.c.b16 %v1787, %v1783
    %v1988 = vpack.c.b16 %v1788, %v1784
    %v1989 = vpack.c.b16 %v1789, %v1785
    %v1990 = vpack.c.b16 %v1790, %v1786
    %v1991 = vpack.c.b16 %v1795, %v1791
    %v1992 = vpack.c.b16 %v1796, %v1792
    %v1993 = vpack.c.b16 %v1797, %v1793
    %v1994 = vpack.c.b16 %v1798, %v1794
    %v1995 = vpack.c.b16 %v1803, %v1799
    %v1996 = vpack.c.b16 %v1804, %v1800
    %v1997 = vpack.c.b16 %v1805, %v1801
    %v1998 = vpack.c.b16 %v1806, %v1802
    %v1999 = vpack.c.b16 %v1811, %v1807
    %v2000 = vpack.c.b16 %v1812, %v1808
    %v2001 = vpack.c.b16 %v1813, %v1809
    %v2002 = vpack.c.b16 %v1814, %v1810
    %v2003 = vpack.c.b16 %v1819, %v1815
    %v2004 = vpack.c.b16 %v1820, %v1816
    %v2005 = vpack.c.b16 %v1821, %v1817
    %v2006 = vpack.c.b16 %v1822, %v1818
    %v2007 = vpack.c.b16 %v1827, %v1823
    %v2008 = vpack.c.b16 %v1828, %v1824
    %v2009 = vpack.c.b16 %v1829, %v1825
    %v2010 = vpack.c.b16 %v1830, %v1826
    %v2011 = vpack.c.b16 %v1835, %v1831
    %v2012 = vpack.c.b16 %v1836, %v1832
    %v2013 = vpack.c.b16 %v1837, %v1833
    %v2014 = vpack.c.b16 %v1838, %v1834
    %v2015 = vpack.c.b16 %v1843, %v1839
    %v2016 = vpack.c.b16 %v1844, %v1840
    %v2017 = vpack.c.b16 %v1845, %v1841
    %v2018 = vpack.c.b16 %v1846, %v1842
    %v2019 = vpack.c.b16 %v1851, %v1847
    %v2020 = vpack.c.b16 %v1852, %v1848
    %v2021 = vpack.c.b16 %v1853, %v1849
    %v2022 = vpack.c.b16 %v1854, %v1850
    %v2023 = vpack.c.b16 %v1859, %v1855
    %v2024 = vpack.c.b16 %v1860, %v1856
    %v2025 = vpack.c.b16 %v1861, %v1857
    %v2026 = vpack.c.b16 %v1862, %v1858
    %v2027 = vpack.c.b16 %v1867, %v1863
    %v2028 = vpack.c.b16 %v1868, %v1864
    %v2029 = vpack.c.b16 %v1869, %v1865
    %v2030 = vpack.c.b16 %v1870, %v1866
    %v2031 = vpack.c.b16 %v1875, %v1871
    %v2032 = vpack.c.b16 %v1876, %v1872
    %v2033 = vpack.c.b16 %v1877, %v1873
    %v2034 = vpack.c.b16 %v1878, %v1874
    %v2035 = vpack.c.b16 %v1883, %v1879
    %v2036 = vpack.c.b16 %v1884, %v1880
    %v2037 = vpack.c.b16 %v1885, %v1881
    %v2038 = vpack.c.b16 %v1886, %v1882
    %v2039 = vpack.c.b16 %v1891, %v1887
    %v2040 = vpack.c.b16 %v1892, %v1888
    %v2041 = vpack.c.b16 %v1893, %v1889
    %v2042 = vpack.c.b16 %v1894, %v1890
    %v2043 = vpack.c.b16 %v1899, %v1895
    %v2044 = vpack.c.b16 %v1900, %v1896
    %v2045 = vpack.c.b16 %v1901, %v1897
    %v2046 = vpack.c.b16 %v1902, %v1898
    %v2047 = vpack.c.b16 %v1907, %v1903
    %v2048 = vpack.c.b16 %v1908, %v1904
    %v2049 = vpack.c.b16 %v1909, %v1905
    %v2050 = vpack.c.b16 %v1910, %v1906
    %v2051 = vpack.c.b16 %v1915, %v1911
    %v2052 = vpack.c.b16 %v1916, %v1912
    %v2053 = vpack.c.b16 %v1917, %v1913
    %v2054 = vpack.c.b16 %v1918, %v1914
    %v2055 = vpack.c.b16 %v1923, %v1919
    %v2056 = vpack.c.b16 %v1924, %v1920
    %v2057 = vpack.c.b16 %v1925, %v1921
    %v2058 = vpack.c.b16 %v1926, %v1922
    %v2059 = vpack.c.b16 %v1931, %v1927
    %v2060 = vpack.c.b16 %v1932, %v1928
    %v2061 = vpack.c.b16 %v1933, %v1929
    %v2062 = vpack.c.b16 %v1934, %v1930
    %2191 = vmatprep.subr.bf16.mxu0 %v1964
    %2192 = vmatpush1.bf16.msra.mxu0 %v1963
    %2193 = vmatprep.subr.bf16.mxu0 %v1960
    %2194 = vmatpush1.bf16.msra.mxu0 %v1959
    %2195 = vmatprep.subr.bf16.mxu0 %v1956
    %2196 = vmatpush1.bf16.msra.mxu0 %v1955
    %2197 = vmatprep.subr.bf16.mxu0 %v1952
    %2198 = vmatpush1.bf16.msra.mxu0 %v1951
    %2199 = vmatprep.subr.bf16.mxu0 %v1948
    %2200 = vmatpush1.bf16.msra.mxu0 %v1947
    %2201 = vmatprep.subr.bf16.mxu0 %v1944
    %2202 = vmatpush1.bf16.msra.mxu0 %v1943
    %2203 = vmatprep.subr.bf16.mxu0 %v1940
    %2204 = vmatpush1.bf16.msra.mxu0 %v1939
    %2205 = vmatprep.subr.bf16.mxu0 %v1936
    %2206 = vmatpush1.bf16.msra.mxu0 %v1935
    %2207 = vmatprep.subr.bf16.mxu0 %v1996
    %2208 = vmatpush2.bf16.msra.mxu0 %v1995
    %2209 = vmatprep.subr.bf16.mxu0 %v1992
    %2210 = vmatpush2.bf16.msra.mxu0 %v1991
    %2211 = vmatprep.subr.bf16.mxu0 %v1988
    %2212 = vmatpush2.bf16.msra.mxu0 %v1987
    %2213 = vmatprep.subr.bf16.mxu0 %v1984
    %2214 = vmatpush2.bf16.msra.mxu0 %v1983
    %2215 = vmatprep.subr.bf16.mxu0 %v1980
    %2216 = vmatpush2.bf16.msra.mxu0 %v1979
    %2217 = vmatprep.subr.bf16.mxu0 %v1976
    %2218 = vmatpush2.bf16.msra.mxu0 %v1975
    %2219 = vmatprep.subr.bf16.mxu0 %v1972
    %2220 = vmatpush2.bf16.msra.mxu0 %v1971
    %2221 = vmatprep.subr.bf16.mxu0 %v1968
    %2222 = vmatpush2.bf16.msra.mxu0 %v1967
    %2223 = vmatprep.mubr.bf16.mxu0 %v436
    %2224 = vmatmul.mubr.bf16.gmra.mxu0 %v435
    %v2225 = vpop.f32.mrf.mxu0
    %v2226 = vadd.f32 %v1534, %v2225
    %v2227 = vpop.f32.mrf.mxu0
    %v2228 = vadd.f32 %v1538, %v2227
    %v2229 = vpop.f32.mrf.mxu0
    %v2230 = vpop.f32.mrf.mxu0
    %2231 = vdwg.mxu0
    %2232 = vmatprep.subr.bf16.mxu0 %v2028
    %2233 = vmatpush1.bf16.msra.mxu0 %v2027
    %2234 = vmatprep.subr.bf16.mxu0 %v2024
    %2235 = vmatpush1.bf16.msra.mxu0 %v2023
    %2236 = vmatprep.subr.bf16.mxu0 %v2020
    %2237 = vmatpush1.bf16.msra.mxu0 %v2019
    %2238 = vmatprep.subr.bf16.mxu0 %v2016
    %2239 = vmatpush1.bf16.msra.mxu0 %v2015
    %2240 = vmatprep.subr.bf16.mxu0 %v2012
    %2241 = vmatpush1.bf16.msra.mxu0 %v2011
    %2242 = vmatprep.subr.bf16.mxu0 %v2008
    %2243 = vmatpush1.bf16.msra.mxu0 %v2007
    %2244 = vmatprep.subr.bf16.mxu0 %v2004
    %2245 = vmatpush1.bf16.msra.mxu0 %v2003
    %2246 = vmatprep.subr.bf16.mxu0 %v2000
    %2247 = vmatpush1.bf16.msra.mxu0 %v1999
    %2248 = vmatprep.subr.bf16.mxu0 %v2060
    %2249 = vmatpush2.bf16.msra.mxu0 %v2059
    %2250 = vmatprep.subr.bf16.mxu0 %v2056
    %2251 = vmatpush2.bf16.msra.mxu0 %v2055
    %2252 = vmatprep.subr.bf16.mxu0 %v2052
    %2253 = vmatpush2.bf16.msra.mxu0 %v2051
    %2254 = vmatprep.subr.bf16.mxu0 %v2048
    %2255 = vmatpush2.bf16.msra.mxu0 %v2047
    %2256 = vmatprep.subr.bf16.mxu0 %v2044
    %2257 = vmatpush2.bf16.msra.mxu0 %v2043
    %2258 = vmatprep.subr.bf16.mxu0 %v2040
    %2259 = vmatpush2.bf16.msra.mxu0 %v2039
    %2260 = vmatprep.subr.bf16.mxu0 %v2036
    %2261 = vmatpush2.bf16.msra.mxu0 %v2035
    %2262 = vmatprep.subr.bf16.mxu0 %v2032
    %2263 = vmatpush2.bf16.msra.mxu0 %v2031
    %2264 = vmatprep.mubr.bf16.mxu0 %v438
    %2265 = vmatmul.mubr.bf16.gmra.mxu0 %v437
    %v2266 = vpop.f32.mrf.mxu0
    %v2267 = vadd.f32 %v2226, %v2266
    %v2268 = vpop.f32.mrf.mxu0
    %v2269 = vadd.f32 %v2228, %v2268
    %v2270 = vpop.f32.mrf.mxu0
    %v2271 = vpop.f32.mrf.mxu0
    %2272 = vdwg.mxu0
    %2273 = vmatprep.subr.bf16.mxu0 %v1966
    %2274 = vmatpush1.bf16.msra.mxu0 %v1965
    %2275 = vmatprep.subr.bf16.mxu0 %v1962
    %2276 = vmatpush1.bf16.msra.mxu0 %v1961
    %2277 = vmatprep.subr.bf16.mxu0 %v1958
    %2278 = vmatpush1.bf16.msra.mxu0 %v1957
    %2279 = vmatprep.subr.bf16.mxu0 %v1954
    %2280 = vmatpush1.bf16.msra.mxu0 %v1953
    %2281 = vmatprep.subr.bf16.mxu0 %v1950
    %2282 = vmatpush1.bf16.msra.mxu0 %v1949
    %2283 = vmatprep.subr.bf16.mxu0 %v1946
    %2284 = vmatpush1.bf16.msra.mxu0 %v1945
    %2285 = vmatprep.subr.bf16.mxu0 %v1942
    %2286 = vmatpush1.bf16.msra.mxu0 %v1941
    %2287 = vmatprep.subr.bf16.mxu0 %v1938
    %2288 = vmatpush1.bf16.msra.mxu0 %v1937
    %2289 = vmatprep.subr.bf16.mxu0 %v1998
    %2290 = vmatpush2.bf16.msra.mxu0 %v1997
    %2291 = vmatprep.subr.bf16.mxu0 %v1994
    %2292 = vmatpush2.bf16.msra.mxu0 %v1993
    %2293 = vmatprep.subr.bf16.mxu0 %v1990
    %2294 = vmatpush2.bf16.msra.mxu0 %v1989
    %2295 = vmatprep.subr.bf16.mxu0 %v1986
    %2296 = vmatpush2.bf16.msra.mxu0 %v1985
    %2297 = vmatprep.subr.bf16.mxu0 %v1982
    %2298 = vmatpush2.bf16.msra.mxu0 %v1981
    %2299 = vmatprep.subr.bf16.mxu0 %v1978
    %2300 = vmatpush2.bf16.msra.mxu0 %v1977
    %2301 = vmatprep.subr.bf16.mxu0 %v1974
    %2302 = vmatpush2.bf16.msra.mxu0 %v1973
    %2303 = vmatprep.subr.bf16.mxu0 %v1970
    %2304 = vmatpush2.bf16.msra.mxu0 %v1969
    %2305 = vmatprep.mubr.bf16.mxu0 %v436
    %2306 = vmatmul.mubr.bf16.gmra.mxu0 %v435
    %v2307 = vpop.f32.mrf.mxu0
    %v2308 = vadd.f32 %v1542, %v2307
    %v2309 = vpop.f32.mrf.mxu0
    %v2310 = vadd.f32 %v1546, %v2309
    %v2311 = vpop.f32.mrf.mxu0
    %v2312 = vpop.f32.mrf.mxu0
    %2313 = vdwg.mxu0
    %2314 = vmatprep.subr.bf16.mxu0 %v2030
    %2315 = vmatpush1.bf16.msra.mxu0 %v2029
    %2316 = vmatprep.subr.bf16.mxu0 %v2026
    %2317 = vmatpush1.bf16.msra.mxu0 %v2025
    %2318 = vmatprep.subr.bf16.mxu0 %v2022
    %2319 = vmatpush1.bf16.msra.mxu0 %v2021
    %2320 = vmatprep.subr.bf16.mxu0 %v2018
    %2321 = vmatpush1.bf16.msra.mxu0 %v2017
    %2322 = vmatprep.subr.bf16.mxu0 %v2014
    %2323 = vmatpush1.bf16.msra.mxu0 %v2013
    %2324 = vmatprep.subr.bf16.mxu0 %v2010
    %2325 = vmatpush1.bf16.msra.mxu0 %v2009
    %2326 = vmatprep.subr.bf16.mxu0 %v2006
    %2327 = vmatpush1.bf16.msra.mxu0 %v2005
    %2328 = vmatprep.subr.bf16.mxu0 %v2002
    %2329 = vmatpush1.bf16.msra.mxu0 %v2001
    %2330 = vmatprep.subr.bf16.mxu0 %v2062
    %2331 = vmatpush2.bf16.msra.mxu0 %v2061
    %2332 = vmatprep.subr.bf16.mxu0 %v2058
    %2333 = vmatpush2.bf16.msra.mxu0 %v2057
    %2334 = vmatprep.subr.bf16.mxu0 %v2054
    %2335 = vmatpush2.bf16.msra.mxu0 %v2053
    %2336 = vmatprep.subr.bf16.mxu0 %v2050
    %2337 = vmatpush2.bf16.msra.mxu0 %v2049
    %2338 = vmatprep.subr.bf16.mxu0 %v2046
    %2339 = vmatpush2.bf16.msra.mxu0 %v2045
    %2340 = vmatprep.subr.bf16.mxu0 %v2042
    %2341 = vmatpush2.bf16.msra.mxu0 %v2041
    %2342 = vmatprep.subr.bf16.mxu0 %v2038
    %2343 = vmatpush2.bf16.msra.mxu0 %v2037
    %2344 = vmatprep.subr.bf16.mxu0 %v2034
    %2345 = vmatpush2.bf16.msra.mxu0 %v2033
    %2346 = vmatprep.mubr.bf16.mxu0 %v438
    %2347 = vmatmul.mubr.bf16.gmra.mxu0 %v437
    %v2348 = vpop.f32.mrf.mxu0
    %v2349 = vadd.f32 %v2308, %v2348
    %v2350 = vpop.f32.mrf.mxu0
    %v2351 = vadd.f32 %v2310, %v2350
    %v2352 = vpop.f32.mrf.mxu0
    %v2353 = vpop.f32.mrf.mxu0
    %2354 = vdwg.mxu0
    %v2355 = vmax.f32 %v2267, 0.0
    %v2356 = vmax.f32 %v2269, 0.0
    %v2357 = vmax.f32 %v2349, 0.0
    %v2358 = vmax.f32 %v2351, 0.0
    %v2359 = vpack.c.bf16 %v2355, %v2355
    %v2360 = vpack.c.bf16 %v2356, %v2356
    %v2361 = vpack.c.bf16 %v2357, %v2357
    %v2362 = vpack.c.bf16 %v2358, %v2358
    %v2363 = vld [vmem:[#allocation11] sm:$0xf]
    %v2364 = vld [vmem:[#allocation11 + $0x4] sm:$0xf]
    %v2365 = vld [vmem:[#allocation11 + $0x8] sm:$0xf]
    %v2366 = vld [vmem:[#allocation11 + $0xc] sm:$0xf]
    %v2367 = vld [vmem:[#allocation11 + $0x10] sm:$0xf]
    %v2368 = vld [vmem:[#allocation11 + $0x14] sm:$0xf]
    %v2369 = vld [vmem:[#allocation11 + $0x18] sm:$0xf]
    %v2370 = vld [vmem:[#allocation11 + $0x1c] sm:$0xf]
    %v2371 = vld [vmem:[#allocation11 + $0x20] sm:$0xf]
    %v2372 = vld [vmem:[#allocation11 + $0x24] sm:$0xf]
    %v2373 = vld [vmem:[#allocation11 + $0x28] sm:$0xf]
    %v2374 = vld [vmem:[#allocation11 + $0x2c] sm:$0xf]
    %v2375 = vld [vmem:[#allocation11 + $0x30] sm:$0xf]
    %v2376 = vld [vmem:[#allocation11 + $0x34] sm:$0xf]
    %v2377 = vld [vmem:[#allocation11 + $0x38] sm:$0xf]
    %v2378 = vld [vmem:[#allocation11 + $0x3c] sm:$0xf]
    %v2379 = vld [vmem:[#allocation11 + $0x40] sm:$0xf]
    %v2380 = vld [vmem:[#allocation11 + $0x44] sm:$0xf]
    %v2381 = vld [vmem:[#allocation11 + $0x48] sm:$0xf]
    %v2382 = vld [vmem:[#allocation11 + $0x4c] sm:$0xf]
    %v2383 = vld [vmem:[#allocation11 + $0x50] sm:$0xf]
    %v2384 = vld [vmem:[#allocation11 + $0x54] sm:$0xf]
    %v2385 = vld [vmem:[#allocation11 + $0x58] sm:$0xf]
    %v2386 = vld [vmem:[#allocation11 + $0x5c] sm:$0xf]
    %v2387 = vld [vmem:[#allocation11 + $0x60] sm:$0xf]
    %v2388 = vld [vmem:[#allocation11 + $0x64] sm:$0xf]
    %v2389 = vld [vmem:[#allocation11 + $0x68] sm:$0xf]
    %v2390 = vld [vmem:[#allocation11 + $0x6c] sm:$0xf]
    %v2391 = vld [vmem:[#allocation11 + $0x70] sm:$0xf]
    %v2392 = vld [vmem:[#allocation11 + $0x74] sm:$0xf]
    %v2393 = vld [vmem:[#allocation11 + $0x78] sm:$0xf]
    %v2394 = vld [vmem:[#allocation11 + $0x7c] sm:$0xf]
    %v2395 = vld [vmem:[#allocation11 + $0x80] sm:$0xf]
    %v2396 = vld [vmem:[#allocation11 + $0x84] sm:$0xf]
    %v2397 = vld [vmem:[#allocation11 + $0x88] sm:$0xf]
    %v2398 = vld [vmem:[#allocation11 + $0x8c] sm:$0xf]
    %v2399 = vld [vmem:[#allocation11 + $0x90] sm:$0xf]
    %v2400 = vld [vmem:[#allocation11 + $0x94] sm:$0xf]
    %v2401 = vld [vmem:[#allocation11 + $0x98] sm:$0xf]
    %v2402 = vld [vmem:[#allocation11 + $0x9c] sm:$0xf]
    %v2403 = vld [vmem:[#allocation11 + $0xa0] sm:$0xf]
    %v2404 = vld [vmem:[#allocation11 + $0xa4] sm:$0xf]
    %v2405 = vld [vmem:[#allocation11 + $0xa8] sm:$0xf]
    %v2406 = vld [vmem:[#allocation11 + $0xac] sm:$0xf]
    %v2407 = vld [vmem:[#allocation11 + $0xb0] sm:$0xf]
    %v2408 = vld [vmem:[#allocation11 + $0xb4] sm:$0xf]
    %v2409 = vld [vmem:[#allocation11 + $0xb8] sm:$0xf]
    %v2410 = vld [vmem:[#allocation11 + $0xbc] sm:$0xf]
    %v2411 = vld [vmem:[#allocation11 + $0xc0] sm:$0xf]
    %v2412 = vld [vmem:[#allocation11 + $0xc4] sm:$0xf]
    %v2413 = vld [vmem:[#allocation11 + $0xc8] sm:$0xf]
    %v2414 = vld [vmem:[#allocation11 + $0xcc] sm:$0xf]
    %v2415 = vld [vmem:[#allocation11 + $0xd0] sm:$0xf]
    %v2416 = vld [vmem:[#allocation11 + $0xd4] sm:$0xf]
    %v2417 = vld [vmem:[#allocation11 + $0xd8] sm:$0xf]
    %v2418 = vld [vmem:[#allocation11 + $0xdc] sm:$0xf]
    %v2419 = vld [vmem:[#allocation11 + $0xe0] sm:$0xf]
    %v2420 = vld [vmem:[#allocation11 + $0xe4] sm:$0xf]
    %v2421 = vld [vmem:[#allocation11 + $0xe8] sm:$0xf]
    %v2422 = vld [vmem:[#allocation11 + $0xec] sm:$0xf]
    %v2423 = vld [vmem:[#allocation11 + $0xf0] sm:$0xf]
    %v2424 = vld [vmem:[#allocation11 + $0xf4] sm:$0xf]
    %v2425 = vld [vmem:[#allocation11 + $0xf8] sm:$0xf]
    %v2426 = vld [vmem:[#allocation11 + $0xfc] sm:$0xf]
    %v2427 = vld [vmem:[#allocation11 + $0x100] sm:$0xf]
    %v2428 = vld [vmem:[#allocation11 + $0x104] sm:$0xf]
    %v2429 = vld [vmem:[#allocation11 + $0x108] sm:$0xf]
    %v2430 = vld [vmem:[#allocation11 + $0x10c] sm:$0xf]
    %v2431 = vld [vmem:[#allocation11 + $0x110] sm:$0xf]
    %v2432 = vld [vmem:[#allocation11 + $0x114] sm:$0xf]
    %v2433 = vld [vmem:[#allocation11 + $0x118] sm:$0xf]
    %v2434 = vld [vmem:[#allocation11 + $0x11c] sm:$0xf]
    %v2435 = vld [vmem:[#allocation11 + $0x120] sm:$0xf]
    %v2436 = vld [vmem:[#allocation11 + $0x124] sm:$0xf]
    %v2437 = vld [vmem:[#allocation11 + $0x128] sm:$0xf]
    %v2438 = vld [vmem:[#allocation11 + $0x12c] sm:$0xf]
    %v2439 = vld [vmem:[#allocation11 + $0x130] sm:$0xf]
    %v2440 = vld [vmem:[#allocation11 + $0x134] sm:$0xf]
    %v2441 = vld [vmem:[#allocation11 + $0x138] sm:$0xf]
    %v2442 = vld [vmem:[#allocation11 + $0x13c] sm:$0xf]
    %v2443 = vld [vmem:[#allocation11 + $0x140] sm:$0xf]
    %v2444 = vld [vmem:[#allocation11 + $0x144] sm:$0xf]
    %v2445 = vld [vmem:[#allocation11 + $0x148] sm:$0xf]
    %v2446 = vld [vmem:[#allocation11 + $0x14c] sm:$0xf]
    %v2447 = vld [vmem:[#allocation11 + $0x150] sm:$0xf]
    %v2448 = vld [vmem:[#allocation11 + $0x154] sm:$0xf]
    %v2449 = vld [vmem:[#allocation11 + $0x158] sm:$0xf]
    %v2450 = vld [vmem:[#allocation11 + $0x15c] sm:$0xf]
    %v2451 = vld [vmem:[#allocation11 + $0x160] sm:$0xf]
    %v2452 = vld [vmem:[#allocation11 + $0x164] sm:$0xf]
    %v2453 = vld [vmem:[#allocation11 + $0x168] sm:$0xf]
    %v2454 = vld [vmem:[#allocation11 + $0x16c] sm:$0xf]
    %v2455 = vld [vmem:[#allocation11 + $0x170] sm:$0xf]
    %v2456 = vld [vmem:[#allocation11 + $0x174] sm:$0xf]
    %v2457 = vld [vmem:[#allocation11 + $0x178] sm:$0xf]
    %v2458 = vld [vmem:[#allocation11 + $0x17c] sm:$0xf]
    %v2459 = vld [vmem:[#allocation11 + $0x180] sm:$0xf]
    %v2460 = vld [vmem:[#allocation11 + $0x184] sm:$0xf]
    %v2461 = vld [vmem:[#allocation11 + $0x188] sm:$0xf]
    %v2462 = vld [vmem:[#allocation11 + $0x18c] sm:$0xf]
    %v2463 = vld [vmem:[#allocation11 + $0x190] sm:$0xf]
    %v2464 = vld [vmem:[#allocation11 + $0x194] sm:$0xf]
    %v2465 = vld [vmem:[#allocation11 + $0x198] sm:$0xf]
    %v2466 = vld [vmem:[#allocation11 + $0x19c] sm:$0xf]
    %v2467 = vld [vmem:[#allocation11 + $0x1a0] sm:$0xf]
    %v2468 = vld [vmem:[#allocation11 + $0x1a4] sm:$0xf]
    %v2469 = vld [vmem:[#allocation11 + $0x1a8] sm:$0xf]
    %v2470 = vld [vmem:[#allocation11 + $0x1ac] sm:$0xf]
    %v2471 = vld [vmem:[#allocation11 + $0x1b0] sm:$0xf]
    %v2472 = vld [vmem:[#allocation11 + $0x1b4] sm:$0xf]
    %v2473 = vld [vmem:[#allocation11 + $0x1b8] sm:$0xf]
    %v2474 = vld [vmem:[#allocation11 + $0x1bc] sm:$0xf]
    %v2475 = vld [vmem:[#allocation11 + $0x1c0] sm:$0xf]
    %v2476 = vld [vmem:[#allocation11 + $0x1c4] sm:$0xf]
    %v2477 = vld [vmem:[#allocation11 + $0x1c8] sm:$0xf]
    %v2478 = vld [vmem:[#allocation11 + $0x1cc] sm:$0xf]
    %v2479 = vld [vmem:[#allocation11 + $0x1d0] sm:$0xf]
    %v2480 = vld [vmem:[#allocation11 + $0x1d4] sm:$0xf]
    %v2481 = vld [vmem:[#allocation11 + $0x1d8] sm:$0xf]
    %v2482 = vld [vmem:[#allocation11 + $0x1dc] sm:$0xf]
    %v2483 = vld [vmem:[#allocation11 + $0x1e0] sm:$0xf]
    %v2484 = vld [vmem:[#allocation11 + $0x1e4] sm:$0xf]
    %v2485 = vld [vmem:[#allocation11 + $0x1e8] sm:$0xf]
    %v2486 = vld [vmem:[#allocation11 + $0x1ec] sm:$0xf]
    %v2487 = vld [vmem:[#allocation11 + $0x1f0] sm:$0xf]
    %v2488 = vld [vmem:[#allocation11 + $0x1f4] sm:$0xf]
    %v2489 = vld [vmem:[#allocation11 + $0x1f8] sm:$0xf]
    %v2490 = vld [vmem:[#allocation11 + $0x1fc] sm:$0xf]
    %v2491 = vld [vmem:[%s8] sm:$0x1]
    %v2493 = vlaneseq
    %v2494 = vshrl.u32 %v2493, 7
    %v2495 = vsub.s32 0, %v2494
    %v2496 = vrot.slane %v2491, %v2495
    %v2626 = vunpack.c.l.b16 %v2363
    %v2627 = vunpack.c.l.b16 %v2364
    %v2628 = vunpack.c.l.b16 %v2365
    %v2629 = vunpack.c.l.b16 %v2366
    %v2630 = vunpack.c.l.b16 %v2367
    %v2631 = vunpack.c.l.b16 %v2368
    %v2632 = vunpack.c.l.b16 %v2369
    %v2633 = vunpack.c.l.b16 %v2370
    %v2634 = vunpack.c.l.b16 %v2371
    %v2635 = vunpack.c.l.b16 %v2372
    %v2636 = vunpack.c.l.b16 %v2373
    %v2637 = vunpack.c.l.b16 %v2374
    %v2638 = vunpack.c.l.b16 %v2375
    %v2639 = vunpack.c.l.b16 %v2376
    %v2640 = vunpack.c.l.b16 %v2377
    %v2641 = vunpack.c.l.b16 %v2378
    %v2642 = vunpack.c.l.b16 %v2379
    %v2643 = vunpack.c.l.b16 %v2380
    %v2644 = vunpack.c.l.b16 %v2381
    %v2645 = vunpack.c.l.b16 %v2382
    %v2646 = vunpack.c.l.b16 %v2383
    %v2647 = vunpack.c.l.b16 %v2384
    %v2648 = vunpack.c.l.b16 %v2385
    %v2649 = vunpack.c.l.b16 %v2386
    %v2650 = vunpack.c.l.b16 %v2387
    %v2651 = vunpack.c.l.b16 %v2388
    %v2652 = vunpack.c.l.b16 %v2389
    %v2653 = vunpack.c.l.b16 %v2390
    %v2654 = vunpack.c.l.b16 %v2391
    %v2655 = vunpack.c.l.b16 %v2392
    %v2656 = vunpack.c.l.b16 %v2393
    %v2657 = vunpack.c.l.b16 %v2394
    %v2658 = vunpack.c.l.b16 %v2395
    %v2659 = vunpack.c.l.b16 %v2396
    %v2660 = vunpack.c.l.b16 %v2397
    %v2661 = vunpack.c.l.b16 %v2398
    %v2662 = vunpack.c.l.b16 %v2399
    %v2663 = vunpack.c.l.b16 %v2400
    %v2664 = vunpack.c.l.b16 %v2401
    %v2665 = vunpack.c.l.b16 %v2402
    %v2666 = vunpack.c.l.b16 %v2403
    %v2667 = vunpack.c.l.b16 %v2404
    %v2668 = vunpack.c.l.b16 %v2405
    %v2669 = vunpack.c.l.b16 %v2406
    %v2670 = vunpack.c.l.b16 %v2407
    %v2671 = vunpack.c.l.b16 %v2408
    %v2672 = vunpack.c.l.b16 %v2409
    %v2673 = vunpack.c.l.b16 %v2410
    %v2674 = vunpack.c.l.b16 %v2411
    %v2675 = vunpack.c.l.b16 %v2412
    %v2676 = vunpack.c.l.b16 %v2413
    %v2677 = vunpack.c.l.b16 %v2414
    %v2678 = vunpack.c.l.b16 %v2415
    %v2679 = vunpack.c.l.b16 %v2416
    %v2680 = vunpack.c.l.b16 %v2417
    %v2681 = vunpack.c.l.b16 %v2418
    %v2682 = vunpack.c.l.b16 %v2419
    %v2683 = vunpack.c.l.b16 %v2420
    %v2684 = vunpack.c.l.b16 %v2421
    %v2685 = vunpack.c.l.b16 %v2422
    %v2686 = vunpack.c.l.b16 %v2423
    %v2687 = vunpack.c.l.b16 %v2424
    %v2688 = vunpack.c.l.b16 %v2425
    %v2689 = vunpack.c.l.b16 %v2426
    %v2690 = vunpack.c.l.b16 %v2427
    %v2691 = vunpack.c.l.b16 %v2428
    %v2692 = vunpack.c.l.b16 %v2429
    %v2693 = vunpack.c.l.b16 %v2430
    %v2694 = vunpack.c.l.b16 %v2431
    %v2695 = vunpack.c.l.b16 %v2432
    %v2696 = vunpack.c.l.b16 %v2433
    %v2697 = vunpack.c.l.b16 %v2434
    %v2698 = vunpack.c.l.b16 %v2435
    %v2699 = vunpack.c.l.b16 %v2436
    %v2700 = vunpack.c.l.b16 %v2437
    %v2701 = vunpack.c.l.b16 %v2438
    %v2702 = vunpack.c.l.b16 %v2439
    %v2703 = vunpack.c.l.b16 %v2440
    %v2704 = vunpack.c.l.b16 %v2441
    %v2705 = vunpack.c.l.b16 %v2442
    %v2706 = vunpack.c.l.b16 %v2443
    %v2707 = vunpack.c.l.b16 %v2444
    %v2708 = vunpack.c.l.b16 %v2445
    %v2709 = vunpack.c.l.b16 %v2446
    %v2710 = vunpack.c.l.b16 %v2447
    %v2711 = vunpack.c.l.b16 %v2448
    %v2712 = vunpack.c.l.b16 %v2449
    %v2713 = vunpack.c.l.b16 %v2450
    %v2714 = vunpack.c.l.b16 %v2451
    %v2715 = vunpack.c.l.b16 %v2452
    %v2716 = vunpack.c.l.b16 %v2453
    %v2717 = vunpack.c.l.b16 %v2454
    %v2718 = vunpack.c.l.b16 %v2455
    %v2719 = vunpack.c.l.b16 %v2456
    %v2720 = vunpack.c.l.b16 %v2457
    %v2721 = vunpack.c.l.b16 %v2458
    %v2722 = vunpack.c.l.b16 %v2459
    %v2723 = vunpack.c.l.b16 %v2460
    %v2724 = vunpack.c.l.b16 %v2461
    %v2725 = vunpack.c.l.b16 %v2462
    %v2726 = vunpack.c.l.b16 %v2463
    %v2727 = vunpack.c.l.b16 %v2464
    %v2728 = vunpack.c.l.b16 %v2465
    %v2729 = vunpack.c.l.b16 %v2466
    %v2730 = vunpack.c.l.b16 %v2467
    %v2731 = vunpack.c.l.b16 %v2468
    %v2732 = vunpack.c.l.b16 %v2469
    %v2733 = vunpack.c.l.b16 %v2470
    %v2734 = vunpack.c.l.b16 %v2471
    %v2735 = vunpack.c.l.b16 %v2472
    %v2736 = vunpack.c.l.b16 %v2473
    %v2737 = vunpack.c.l.b16 %v2474
    %v2738 = vunpack.c.l.b16 %v2475
    %v2739 = vunpack.c.l.b16 %v2476
    %v2740 = vunpack.c.l.b16 %v2477
    %v2741 = vunpack.c.l.b16 %v2478
    %v2742 = vunpack.c.l.b16 %v2479
    %v2743 = vunpack.c.l.b16 %v2480
    %v2744 = vunpack.c.l.b16 %v2481
    %v2745 = vunpack.c.l.b16 %v2482
    %v2746 = vunpack.c.l.b16 %v2483
    %v2747 = vunpack.c.l.b16 %v2484
    %v2748 = vunpack.c.l.b16 %v2485
    %v2749 = vunpack.c.l.b16 %v2486
    %v2750 = vunpack.c.l.b16 %v2487
    %v2751 = vunpack.c.l.b16 %v2488
    %v2752 = vunpack.c.l.b16 %v2489
    %v2753 = vunpack.c.l.b16 %v2490
    %v2754 = vpack.c.b16 %v2627, %v2626
    %v2755 = vpack.c.b16 %v2629, %v2628
    %v2756 = vpack.c.b16 %v2631, %v2630
    %v2757 = vpack.c.b16 %v2633, %v2632
    %v2758 = vpack.c.b16 %v2635, %v2634
    %v2759 = vpack.c.b16 %v2637, %v2636
    %v2760 = vpack.c.b16 %v2639, %v2638
    %v2761 = vpack.c.b16 %v2641, %v2640
    %v2762 = vpack.c.b16 %v2643, %v2642
    %v2763 = vpack.c.b16 %v2645, %v2644
    %v2764 = vpack.c.b16 %v2647, %v2646
    %v2765 = vpack.c.b16 %v2649, %v2648
    %v2766 = vpack.c.b16 %v2651, %v2650
    %v2767 = vpack.c.b16 %v2653, %v2652
    %v2768 = vpack.c.b16 %v2655, %v2654
    %v2769 = vpack.c.b16 %v2657, %v2656
    %v2770 = vpack.c.b16 %v2659, %v2658
    %v2771 = vpack.c.b16 %v2661, %v2660
    %v2772 = vpack.c.b16 %v2663, %v2662
    %v2773 = vpack.c.b16 %v2665, %v2664
    %v2774 = vpack.c.b16 %v2667, %v2666
    %v2775 = vpack.c.b16 %v2669, %v2668
    %v2776 = vpack.c.b16 %v2671, %v2670
    %v2777 = vpack.c.b16 %v2673, %v2672
    %v2778 = vpack.c.b16 %v2675, %v2674
    %v2779 = vpack.c.b16 %v2677, %v2676
    %v2780 = vpack.c.b16 %v2679, %v2678
    %v2781 = vpack.c.b16 %v2681, %v2680
    %v2782 = vpack.c.b16 %v2683, %v2682
    %v2783 = vpack.c.b16 %v2685, %v2684
    %v2784 = vpack.c.b16 %v2687, %v2686
    %v2785 = vpack.c.b16 %v2689, %v2688
    %v2786 = vpack.c.b16 %v2691, %v2690
    %v2787 = vpack.c.b16 %v2693, %v2692
    %v2788 = vpack.c.b16 %v2695, %v2694
    %v2789 = vpack.c.b16 %v2697, %v2696
    %v2790 = vpack.c.b16 %v2699, %v2698
    %v2791 = vpack.c.b16 %v2701, %v2700
    %v2792 = vpack.c.b16 %v2703, %v2702
    %v2793 = vpack.c.b16 %v2705, %v2704
    %v2794 = vpack.c.b16 %v2707, %v2706
    %v2795 = vpack.c.b16 %v2709, %v2708
    %v2796 = vpack.c.b16 %v2711, %v2710
    %v2797 = vpack.c.b16 %v2713, %v2712
    %v2798 = vpack.c.b16 %v2715, %v2714
    %v2799 = vpack.c.b16 %v2717, %v2716
    %v2800 = vpack.c.b16 %v2719, %v2718
    %v2801 = vpack.c.b16 %v2721, %v2720
    %v2802 = vpack.c.b16 %v2723, %v2722
    %v2803 = vpack.c.b16 %v2725, %v2724
    %v2804 = vpack.c.b16 %v2727, %v2726
    %v2805 = vpack.c.b16 %v2729, %v2728
    %v2806 = vpack.c.b16 %v2731, %v2730
    %v2807 = vpack.c.b16 %v2733, %v2732
    %v2808 = vpack.c.b16 %v2735, %v2734
    %v2809 = vpack.c.b16 %v2737, %v2736
    %v2810 = vpack.c.b16 %v2739, %v2738
    %v2811 = vpack.c.b16 %v2741, %v2740
    %v2812 = vpack.c.b16 %v2743, %v2742
    %v2813 = vpack.c.b16 %v2745, %v2744
    %v2814 = vpack.c.b16 %v2747, %v2746
    %v2815 = vpack.c.b16 %v2749, %v2748
    %v2816 = vpack.c.b16 %v2751, %v2750
    %v2817 = vpack.c.b16 %v2753, %v2752
    %2882 = vmatprep.subr.bf16.mxu0 0
    %2883 = vmatpush1.bf16.msra.mxu0 %v2761
    %2884 = vmatprep.subr.bf16.mxu0 0
    %2885 = vmatpush1.bf16.msra.mxu0 %v2760
    %2886 = vmatprep.subr.bf16.mxu0 0
    %2887 = vmatpush1.bf16.msra.mxu0 %v2759
    %2888 = vmatprep.subr.bf16.mxu0 0
    %2889 = vmatpush1.bf16.msra.mxu0 %v2758
    %2890 = vmatprep.subr.bf16.mxu0 0
    %2891 = vmatpush1.bf16.msra.mxu0 %v2757
    %2892 = vmatprep.subr.bf16.mxu0 0
    %2893 = vmatpush1.bf16.msra.mxu0 %v2756
    %2894 = vmatprep.subr.bf16.mxu0 0
    %2895 = vmatpush1.bf16.msra.mxu0 %v2755
    %2896 = vmatprep.subr.bf16.mxu0 0
    %2897 = vmatpush1.bf16.msra.mxu0 %v2754
    %2898 = vmatprep.subr.bf16.mxu0 0
    %2899 = vmatpush2.bf16.msra.mxu0 %v2769
    %2900 = vmatprep.subr.bf16.mxu0 0
    %2901 = vmatpush2.bf16.msra.mxu0 %v2768
    %2902 = vmatprep.subr.bf16.mxu0 0
    %2903 = vmatpush2.bf16.msra.mxu0 %v2767
    %2904 = vmatprep.subr.bf16.mxu0 0
    %2905 = vmatpush2.bf16.msra.mxu0 %v2766
    %2906 = vmatprep.subr.bf16.mxu0 0
    %2907 = vmatpush2.bf16.msra.mxu0 %v2765
    %2908 = vmatprep.subr.bf16.mxu0 0
    %2909 = vmatpush2.bf16.msra.mxu0 %v2764
    %2910 = vmatprep.subr.bf16.mxu0 0
    %2911 = vmatpush2.bf16.msra.mxu0 %v2763
    %2912 = vmatprep.subr.bf16.mxu0 0
    %2913 = vmatpush2.bf16.msra.mxu0 %v2762
    %2914 = vmatprep.mubr.bf16.mxu0 %v1398
    %2915 = vmatmul.mubr.bf16.gmra.mxu0 %v1397
    %v2916 = vpop.f32.mrf.mxu0
    %v2917 = vadd.f32 %v2496, %v2916
    %v2918 = vpop.f32.mrf.mxu0
    %v2919 = vpop.f32.mrf.mxu0
    %v2920 = vpop.f32.mrf.mxu0
    %2921 = vdwg.mxu0
    %2922 = vmatprep.subr.bf16.mxu0 0
    %2923 = vmatpush1.bf16.msra.mxu0 %v2777
    %2924 = vmatprep.subr.bf16.mxu0 0
    %2925 = vmatpush1.bf16.msra.mxu0 %v2776
    %2926 = vmatprep.subr.bf16.mxu0 0
    %2927 = vmatpush1.bf16.msra.mxu0 %v2775
    %2928 = vmatprep.subr.bf16.mxu0 0
    %2929 = vmatpush1.bf16.msra.mxu0 %v2774
    %2930 = vmatprep.subr.bf16.mxu0 0
    %2931 = vmatpush1.bf16.msra.mxu0 %v2773
    %2932 = vmatprep.subr.bf16.mxu0 0
    %2933 = vmatpush1.bf16.msra.mxu0 %v2772
    %2934 = vmatprep.subr.bf16.mxu0 0
    %2935 = vmatpush1.bf16.msra.mxu0 %v2771
    %2936 = vmatprep.subr.bf16.mxu0 0
    %2937 = vmatpush1.bf16.msra.mxu0 %v2770
    %2938 = vmatprep.subr.bf16.mxu0 0
    %2939 = vmatpush2.bf16.msra.mxu0 %v2785
    %2940 = vmatprep.subr.bf16.mxu0 0
    %2941 = vmatpush2.bf16.msra.mxu0 %v2784
    %2942 = vmatprep.subr.bf16.mxu0 0
    %2943 = vmatpush2.bf16.msra.mxu0 %v2783
    %2944 = vmatprep.subr.bf16.mxu0 0
    %2945 = vmatpush2.bf16.msra.mxu0 %v2782
    %2946 = vmatprep.subr.bf16.mxu0 0
    %2947 = vmatpush2.bf16.msra.mxu0 %v2781
    %2948 = vmatprep.subr.bf16.mxu0 0
    %2949 = vmatpush2.bf16.msra.mxu0 %v2780
    %2950 = vmatprep.subr.bf16.mxu0 0
    %2951 = vmatpush2.bf16.msra.mxu0 %v2779
    %2952 = vmatprep.subr.bf16.mxu0 0
    %2953 = vmatpush2.bf16.msra.mxu0 %v2778
    %2954 = vmatprep.mubr.bf16.mxu0 %v1400
    %2955 = vmatmul.mubr.bf16.gmra.mxu0 %v1399
    %v2956 = vpop.f32.mrf.mxu0
    %v2957 = vadd.f32 %v2917, %v2956
    %v2958 = vpop.f32.mrf.mxu0
    %v2959 = vpop.f32.mrf.mxu0
    %v2960 = vpop.f32.mrf.mxu0
    %2961 = vdwg.mxu0
    %2962 = vmatprep.subr.bf16.mxu0 0
    %2963 = vmatpush1.bf16.msra.mxu0 %v2793
    %2964 = vmatprep.subr.bf16.mxu0 0
    %2965 = vmatpush1.bf16.msra.mxu0 %v2792
    %2966 = vmatprep.subr.bf16.mxu0 0
    %2967 = vmatpush1.bf16.msra.mxu0 %v2791
    %2968 = vmatprep.subr.bf16.mxu0 0
    %2969 = vmatpush1.bf16.msra.mxu0 %v2790
    %2970 = vmatprep.subr.bf16.mxu0 0
    %2971 = vmatpush1.bf16.msra.mxu0 %v2789
    %2972 = vmatprep.subr.bf16.mxu0 0
    %2973 = vmatpush1.bf16.msra.mxu0 %v2788
    %2974 = vmatprep.subr.bf16.mxu0 0
    %2975 = vmatpush1.bf16.msra.mxu0 %v2787
    %2976 = vmatprep.subr.bf16.mxu0 0
    %2977 = vmatpush1.bf16.msra.mxu0 %v2786
    %2978 = vmatprep.subr.bf16.mxu0 0
    %2979 = vmatpush2.bf16.msra.mxu0 %v2801
    %2980 = vmatprep.subr.bf16.mxu0 0
    %2981 = vmatpush2.bf16.msra.mxu0 %v2800
    %2982 = vmatprep.subr.bf16.mxu0 0
    %2983 = vmatpush2.bf16.msra.mxu0 %v2799
    %2984 = vmatprep.subr.bf16.mxu0 0
    %2985 = vmatpush2.bf16.msra.mxu0 %v2798
    %2986 = vmatprep.subr.bf16.mxu0 0
    %2987 = vmatpush2.bf16.msra.mxu0 %v2797
    %2988 = vmatprep.subr.bf16.mxu0 0
    %2989 = vmatpush2.bf16.msra.mxu0 %v2796
    %2990 = vmatprep.subr.bf16.mxu0 0
    %2991 = vmatpush2.bf16.msra.mxu0 %v2795
    %2992 = vmatprep.subr.bf16.mxu0 0
    %2993 = vmatpush2.bf16.msra.mxu0 %v2794
    %2994 = vmatprep.mubr.bf16.mxu0 %v2360
    %2995 = vmatmul.mubr.bf16.gmra.mxu0 %v2359
    %v2996 = vpop.f32.mrf.mxu0
    %v2997 = vadd.f32 %v2957, %v2996
    %v2998 = vpop.f32.mrf.mxu0
    %v2999 = vpop.f32.mrf.mxu0
    %v3000 = vpop.f32.mrf.mxu0
    %3001 = vdwg.mxu0
    %3002 = vmatprep.subr.bf16.mxu0 0
    %3003 = vmatpush1.bf16.msra.mxu0 %v2809
    %3004 = vmatprep.subr.bf16.mxu0 0
    %3005 = vmatpush1.bf16.msra.mxu0 %v2808
    %3006 = vmatprep.subr.bf16.mxu0 0
    %3007 = vmatpush1.bf16.msra.mxu0 %v2807
    %3008 = vmatprep.subr.bf16.mxu0 0
    %3009 = vmatpush1.bf16.msra.mxu0 %v2806
    %3010 = vmatprep.subr.bf16.mxu0 0
    %3011 = vmatpush1.bf16.msra.mxu0 %v2805
    %3012 = vmatprep.subr.bf16.mxu0 0
    %3013 = vmatpush1.bf16.msra.mxu0 %v2804
    %3014 = vmatprep.subr.bf16.mxu0 0
    %3015 = vmatpush1.bf16.msra.mxu0 %v2803
    %3016 = vmatprep.subr.bf16.mxu0 0
    %3017 = vmatpush1.bf16.msra.mxu0 %v2802
    %3018 = vmatprep.subr.bf16.mxu0 0
    %3019 = vmatpush2.bf16.msra.mxu0 %v2817
    %3020 = vmatprep.subr.bf16.mxu0 0
    %3021 = vmatpush2.bf16.msra.mxu0 %v2816
    %3022 = vmatprep.subr.bf16.mxu0 0
    %3023 = vmatpush2.bf16.msra.mxu0 %v2815
    %3024 = vmatprep.subr.bf16.mxu0 0
    %3025 = vmatpush2.bf16.msra.mxu0 %v2814
    %3026 = vmatprep.subr.bf16.mxu0 0
    %3027 = vmatpush2.bf16.msra.mxu0 %v2813
    %3028 = vmatprep.subr.bf16.mxu0 0
    %3029 = vmatpush2.bf16.msra.mxu0 %v2812
    %3030 = vmatprep.subr.bf16.mxu0 0
    %3031 = vmatpush2.bf16.msra.mxu0 %v2811
    %3032 = vmatprep.subr.bf16.mxu0 0
    %3033 = vmatpush2.bf16.msra.mxu0 %v2810
    %3034 = vmatprep.mubr.bf16.mxu0 %v2362
    %3035 = vmatmul.mubr.bf16.gmra.mxu0 %v2361
    %v3036 = vpop.f32.mrf.mxu0
    %v3037 = vadd.f32 %v2997, %v3036
    %v3038 = vpop.f32.mrf.mxu0
    %v3039 = vpop.f32.mrf.mxu0
    %v3040 = vpop.f32.mrf.mxu0
    %3041 = vdwg.mxu0
    %v3042 = vmul.f32 %v3037, %v3037
    %3043 = vadd.xlane.f32.xlu0 %v3042
    %v3044 = vpop.xlane.xlu0 %3043
    %v3045 = vrsqrt.pop %v3044
    %v3046 = vmul.f32 %v3044, %v3045
    %vm3047 = vcmp.eq.f32.partialorder %v3044, inf
    %v3048 = vsel %vm3047, %v3044, %v3046
    %vm3049 = vcmp.eq.f32.partialorder %v3044, 0.0
    %v3050 = vand.u32 %v3044, 2147483648
    %v3051 = vsel %vm3049, %v3050, %v3048
    %v3052 = vmul.f32 %v3051, -0.020202707
    %v3053 = vmul.f32 %v3052, 1.442695
    %v3054 = vpow.pop %v3053
    %v3055 = vsub.f32 1.0, %v3054
    %v3056 = vmul.f32 %v3055, -50.0
    %v3058 = vlaneseq
    %v3059 = vand.u32 %v3058, 127
    %v3060 = vlaneseq
    %v3061 = vshrl.u32 %v3060, 7
    %v3062 = vsub.s32 %v3059, %v3061
    %v3063 = vrot.slane %v3056, %v3062
    %vm3065 = vcmask 57344
    %3066 = vst.msk [vmem:[#allocation13] sm:$0x1] %vm3065, %v3063
    // Predicated region
    $region62: #{tpu_custom_call.1} parent=1 // pred_check
      _
    $region63: #{tpu_custom_call.1} parent=1 // pred_check_branch
      %3068 = sbr.rel (0) target = $region65
    $region64: #{tpu_custom_call.1} parent=1 // pred_region
      %s3070 = ssub.s32 16, 16
      %3071 = vsyncadd [#allocation4], %s3070
      %s3073 = sshll.u32 [#allocation13], 4
      %s3074 = int_to_ptr.vmem [resolvable:$true] %s3073
      %3076 = dma.vmem_to_hbm [thread:$0]  %s3074, 16, %s9, [#allocation4]
    $region65: #{tpu_custom_call.1} parent=1 // pred_fallthru
      _
    // Predicated region
    $region66: #{tpu_custom_call.1} parent=1 // pred_check
      _
    $region67: #{tpu_custom_call.1} parent=1 // pred_check_branch
      %3078 = sbr.rel (0) target = $region69
    $region68: #{tpu_custom_call.1} parent=1 // pred_region
      %3079 = dma.done [#allocation4], 16
    $region69: #{tpu_custom_call.1} parent=1 // pred_fallthru
      _
    %3080 = vsyncpa [#allocation3], 1
    %3081 = vsyncpa [#allocation6], 1
    %3082 = vsyncpa [#allocation9], 1
    %3083 = vsyncpa [#allocation12], 1
    %3084 = vsyncpa [#allocation4], 1

</llo_original>
